<compile_context>
chip_gen: v7x
topology: tpu7x:2x2x1
jax: 0.10.0
libtpu: 0.0.40
codegen_flags: <defaults>
</compile_context>

<pallas_src>
import jax
import jax.numpy as jnp
from jax.experimental import pallas as pl
from jax.experimental.pallas import tpu as pltpu


# ----------------------------------------------------------------------------
# Fused forward kernel factory.
# ----------------------------------------------------------------------------
def _make_fused_kernel(T, Bp, layer_dims):
    """layer_dims: tuple of (d_in, hidden) per LSTM layer."""
    L = len(layer_dims)

    def kernel(*refs):
        # refs layout: x, (wx, wh, b) * L, fc_w, fc_b, out
        x_ref = refs[0]
        w_refs = refs[1:1 + 3 * L]
        fcw_ref = refs[1 + 3 * L]
        fcb_ref = refs[2 + 3 * L]
        out_ref = refs[3 + 3 * L]

        seq_in = x_ref[...]                       # (T*Bp, D_in of layer 0)
        h = None
        for l in range(L):
            _, H = layer_dims[l]
            wx = w_refs[3 * l][...]               # (d_in, 4H)  i/f/o cols pre-scaled 0.5
            wh = w_refs[3 * l + 1][...]           # (H,   4H)   i/f/o cols pre-scaled 0.5
            b = w_refs[3 * l + 2][...]            # (1,   4H)   i/f/o cols pre-scaled 0.5

            # Hoisted, time-invariant input projection for the whole sequence.
            gx = jnp.dot(seq_in, wx, preferred_element_type=jnp.float32) + b  # (T*Bp, 4H)

            h = jnp.zeros((Bp, H), jnp.float32)
            c = jnp.zeros((Bp, H), jnp.float32)
            hs = []
            for t in range(T):                    # statically unrolled recurrence
                gates = gx[t * Bp:(t + 1) * Bp, :] + jnp.dot(
                    h, wh, preferred_element_type=jnp.float32)   # (Bp, 4H)
                # One full-width EUP tanh over all four gate bands, then a single
                # full-width VPU affine to recover the sigmoids (i/f/o pre-scaled
                # by 0.5 in the wrapper: sigmoid(x) = 0.5*tanh(x/2) + 0.5).
                t_full = jnp.tanh(gates)          # (Bp, 4H)
                s_full = 0.5 * t_full + 0.5       # (Bp, 4H)
                i_g = s_full[:, 0 * H:1 * H]
                f_g = s_full[:, 1 * H:2 * H]
                g_g = t_full[:, 2 * H:3 * H]      # g band is a plain tanh (unscaled)
                o_g = s_full[:, 3 * H:4 * H]
                c = f_g * c + i_g * g_g
                h = o_g * jnp.tanh(c)
                if l < L - 1:
                    hs.append(h)                  # keep the sequence live in vregs
            if l < L - 1:
                # (T*Bp, H) built from vregs; feeds next layer's hoisted matmul.
                seq_in = jnp.concatenate(hs, axis=0)

        # Classifier head on lstm_out[-1] (== final hidden of last layer).
        # fc_w / fc_b are padded to 128 lanes (bias pad = -1e30), so the store
        # and reductions below are full-lane and the normalizer is exact.
        logits = jnp.dot(h, fcw_ref[...], preferred_element_type=jnp.float32) + fcb_ref[...]
        m = jnp.max(logits, axis=-1, keepdims=True)
        z = logits - m
        lse = jnp.log(jnp.sum(jnp.exp(z), axis=-1, keepdims=True))
        out_ref[...] = z - lse

    return kernel


# ----------------------------------------------------------------------------
# Wrapper: pads batch/lanes, folds the sigmoid->tanh scaling into the weights,
# and launches one gridless pallas_call with everything resident in VMEM.
# ----------------------------------------------------------------------------
@jax.jit
def lstm_keyword_spotter_forward(params, audio):
    """audio: (T, B, input_dim) -> (B, num_keywords) log-probabilities."""
    T, B, D = audio.shape
    Bp = ((B + 7) // 8) * 8                       # pad batch to f32 sublane width
    layer_dims = tuple((lay["wx"].shape[0], lay["wh"].shape[0]) for lay in params["lstm"])
    K = params["fc_w"].shape[1]
    Kp = ((K + 127) // 128) * 128                 # lane-dense classifier head

    # Pad batch, then flatten (T, Bp, D) -> (T*Bp, D) outside the kernel.
    x = jnp.pad(audio.astype(jnp.float32), ((0, 0), (0, Bp - B), (0, 0)))
    x = x.reshape(T * Bp, D)

    inputs = [x]
    for (_, H), lay in zip(layer_dims, params["lstm"]):
        # Fold sigmoid(x) = 0.5*tanh(x/2) + 0.5: scale i/f/o gate columns by 0.5,
        # leave the g band at full scale (it takes a plain tanh in the kernel).
        scale = jnp.concatenate([
            jnp.full((H,), 0.5, jnp.float32),     # i
            jnp.full((H,), 0.5, jnp.float32),     # f
            jnp.ones((H,), jnp.float32),          # g
            jnp.full((H,), 0.5, jnp.float32),     # o
        ])[None, :]
        inputs += [lay["wx"] * scale, lay["wh"] * scale, lay["b"] * scale]

    # Pad the head to 128 lanes; padded bias lanes get a large negative value so
    # the log_softmax max/sum are unperturbed.
    fc_w = jnp.pad(params["fc_w"], ((0, 0), (0, Kp - K)))
    fc_b = jnp.pad(params["fc_b"], ((0, 0), (0, Kp - K)), constant_values=-1e30)
    inputs += [fc_w, fc_b]

    kernel = _make_fused_kernel(T, Bp, layer_dims)
    vmem_spec = pl.BlockSpec(memory_space=pltpu.MemorySpace.VMEM)

    out = pl.pallas_call(
        kernel,
        out_shape=jax.ShapeDtypeStruct((Bp, Kp), jnp.float32),
        in_specs=[vmem_spec] * len(inputs),
        out_specs=vmem_spec,
    )(*inputs)
    return out[:B, :K]


# ----------------------------------------------------------------------------
# Parameter construction (matches nn.LSTM / nn.Linear shapes & init ranges).
# ----------------------------------------------------------------------------
def init_params(key, input_dim, hidden_units, num_keywords, num_layers):
    params = {}
    layer_dims = [(input_dim, hidden_units)]
    if num_layers > 1:
        layer_dims.append((hidden_units, hidden_units))
    if num_layers > 2:
        layer_dims.append((hidden_units, num_keywords))
    last_output_size = layer_dims[-1][1]

    keys = jax.random.split(key, 4 * len(layer_dims) + 2)
    ki = 0
    params["lstm"] = []
    for d_in, h in layer_dims:
        s = 1.0 / jnp.sqrt(h)
        w_ih = jax.random.uniform(keys[ki], (4 * h, d_in), jnp.float32, -s, s); ki += 1
        w_hh = jax.random.uniform(keys[ki], (4 * h, h), jnp.float32, -s, s); ki += 1
        b_ih = jax.random.uniform(keys[ki], (4 * h,), jnp.float32, -s, s); ki += 1
        b_hh = jax.random.uniform(keys[ki], (4 * h,), jnp.float32, -s, s); ki += 1
        params["lstm"].append(
            dict(
                wx=w_ih.T,                    # (d_in, 4h) -> x @ wx == x @ W_ih^T
                wh=w_hh.T,                    # (h, 4h)
                b=(b_ih + b_hh)[None, :],     # (1, 4h)  biases pre-summed
            )
        )
    s = 1.0 / jnp.sqrt(last_output_size)
    w_fc = jax.random.uniform(keys[ki], (num_keywords, last_output_size),
                              jnp.float32, -s, s); ki += 1
    b_fc = jax.random.uniform(keys[ki], (num_keywords,), jnp.float32, -s, s); ki += 1
    params["fc_w"] = w_fc.T                   # (last_output_size, num_keywords)
    params["fc_b"] = b_fc[None, :]            # (1, num_keywords)
    return params


# ----------------------------------------------------------------------------
# Pure-JAX reference (same math, no Pallas, no folds) for a correctness check.
# ----------------------------------------------------------------------------
def _reference_forward(params, audio):
    out = audio
    for lay in params["lstm"]:
        wx, wh, b = lay["wx"], lay["wh"], lay["b"]
        H = wh.shape[0]
        T, B, _ = out.shape
        h = jnp.zeros((B, H), jnp.float32)
        c = jnp.zeros((B, H), jnp.float32)
        ys = []
        for t in range(T):
            gates = out[t] @ wx + h @ wh + b
            i_g = jax.nn.sigmoid(gates[:, 0 * H:1 * H])
            f_g = jax.nn.sigmoid(gates[:, 1 * H:2 * H])
            g_g = jnp.tanh(gates[:, 2 * H:3 * H])
            o_g = jax.nn.sigmoid(gates[:, 3 * H:4 * H])
            c = f_g * c + i_g * g_g
            h = o_g * jnp.tanh(c)
            ys.append(h)
        out = jnp.stack(ys, axis=0)
    logits = out[-1] @ params["fc_w"] + params["fc_b"]
    return jax.nn.log_softmax(logits, axis=-1)


if __name__ == "__main__":
    # Small config consistent with the module: 2-layer LSTM keyword spotter.
    T, B = 8, 2
    input_dim = 16
    hidden_units = 32
    num_keywords = 10
    num_layers = 2

    key = jax.random.PRNGKey(0)
    k_param, k_data = jax.random.split(key)
    params = init_params(k_param, input_dim, hidden_units, num_keywords, num_layers)
    audio = jax.random.normal(k_data, (T, B, input_dim), jnp.float32)

    log_probs = lstm_keyword_spotter_forward(params, audio)
    jax.block_until_ready(log_probs)

    assert log_probs.shape == (B, num_keywords)
    # log_softmax sanity: rows sum to ~1 in prob space.
    assert jnp.allclose(jnp.sum(jnp.exp(log_probs), axis=-1), 1.0, atol=1e-4)
    # Match the pure-JAX reference (unfolded sigmoid path).
    ref = _reference_forward(params, audio)
    assert jnp.allclose(log_probs, ref, atol=1e-4, rtol=1e-4)
    print("KERNEL_OK")
</pallas_src>

<mosaic_0001>
module attributes {stable_mosaic.version = 11 : i64} {
  func.func @kernel(%arg0: memref<64x16xf32, #tpu.memory_space<vmem>>, %arg1: memref<16x128xf32, #tpu.memory_space<vmem>>, %arg2: memref<32x128xf32, #tpu.memory_space<vmem>>, %arg3: memref<1x128xf32, #tpu.memory_space<vmem>>, %arg4: memref<32x128xf32, #tpu.memory_space<vmem>>, %arg5: memref<32x128xf32, #tpu.memory_space<vmem>>, %arg6: memref<1x128xf32, #tpu.memory_space<vmem>>, %arg7: memref<32x128xf32, #tpu.memory_space<vmem>>, %arg8: memref<1x128xf32, #tpu.memory_space<vmem>>, %arg9: memref<8x128xf32, #tpu.memory_space<vmem>>) attributes {dimension_semantics = [], scalar_prefetch = 0 : i64, scratch_operands = 0 : i64, tpu.core_type = #tpu.core_type<tc>} {
    %c0 = arith.constant 0 : index
    %c0_0 = arith.constant 0 : index
    %0 = vector.load %arg0[%c0, %c0_0] : memref<64x16xf32, #tpu.memory_space<vmem>>, vector<64x16xf32>
    %c0_1 = arith.constant 0 : index
    %c0_2 = arith.constant 0 : index
    %1 = vector.load %arg1[%c0_1, %c0_2] : memref<16x128xf32, #tpu.memory_space<vmem>>, vector<16x128xf32>
    %c0_3 = arith.constant 0 : index
    %c0_4 = arith.constant 0 : index
    %2 = vector.load %arg2[%c0_3, %c0_4] : memref<32x128xf32, #tpu.memory_space<vmem>>, vector<32x128xf32>
    %c0_5 = arith.constant 0 : index
    %c0_6 = arith.constant 0 : index
    %3 = vector.load %arg3[%c0_5, %c0_6] : memref<1x128xf32, #tpu.memory_space<vmem>>, vector<1x128xf32>
    %cst = arith.constant dense<0.000000e+00> : vector<64x128xf32>
    %4 = tpu.matmul %0, %1, %cst {dimension_numbers = #tpu.dot_dimension_numbers<[1], [0], [0], [1], [0, 0, 1, 1], [], []>} : vector<64x16xf32>, vector<16x128xf32>, vector<64x128xf32> -> vector<64x128xf32>
    %5 = vector.broadcast %3 : vector<1x128xf32> to vector<64x128xf32>
    %6 = arith.addf %4, %5 : vector<64x128xf32>
    %cst_7 = arith.constant 0.000000e+00 : f32
    %7 = vector.broadcast %cst_7 : f32 to vector<8x32xf32>
    %cst_8 = arith.constant 0.000000e+00 : f32
    %8 = vector.broadcast %cst_8 : f32 to vector<8x32xf32>
    %9 = vector.extract_strided_slice %6 {offsets = [0, 0], sizes = [8, 128], strides = [1, 1]} : vector<64x128xf32> to vector<8x128xf32>
    %cst_9 = arith.constant dense<0.000000e+00> : vector<8x128xf32>
    %10 = tpu.matmul %7, %2, %cst_9 {dimension_numbers = #tpu.dot_dimension_numbers<[1], [0], [0], [1], [0, 0, 1, 1], [], []>} : vector<8x32xf32>, vector<32x128xf32>, vector<8x128xf32> -> vector<8x128xf32>
    %11 = arith.addf %9, %10 : vector<8x128xf32>
    %12 = math.tanh %11 : vector<8x128xf32>
    %cst_10 = arith.constant 5.000000e-01 : f32
    %13 = vector.broadcast %cst_10 : f32 to vector<8x128xf32>
    %14 = arith.mulf %13, %12 : vector<8x128xf32>
    %cst_11 = arith.constant 5.000000e-01 : f32
    %15 = vector.broadcast %cst_11 : f32 to vector<8x128xf32>
    %16 = arith.addf %14, %15 : vector<8x128xf32>
    %17 = vector.extract_strided_slice %16 {offsets = [0, 0], sizes = [8, 32], strides = [1, 1]} : vector<8x128xf32> to vector<8x32xf32>
    %18 = vector.extract_strided_slice %16 {offsets = [0, 32], sizes = [8, 32], strides = [1, 1]} : vector<8x128xf32> to vector<8x32xf32>
    %19 = vector.extract_strided_slice %12 {offsets = [0, 64], sizes = [8, 32], strides = [1, 1]} : vector<8x128xf32> to vector<8x32xf32>
    %20 = vector.extract_strided_slice %16 {offsets = [0, 96], sizes = [8, 32], strides = [1, 1]} : vector<8x128xf32> to vector<8x32xf32>
    %21 = arith.mulf %18, %8 : vector<8x32xf32>
    %22 = arith.mulf %17, %19 : vector<8x32xf32>
    %23 = arith.addf %21, %22 : vector<8x32xf32>
    %24 = math.tanh %23 : vector<8x32xf32>
    %25 = arith.mulf %20, %24 : vector<8x32xf32>
    %26 = vector.extract_strided_slice %6 {offsets = [8, 0], sizes = [8, 128], strides = [1, 1]} : vector<64x128xf32> to vector<8x128xf32>
    %cst_12 = arith.constant dense<0.000000e+00> : vector<8x128xf32>
    %27 = tpu.matmul %25, %2, %cst_12 {dimension_numbers = #tpu.dot_dimension_numbers<[1], [0], [0], [1], [0, 0, 1, 1], [], []>} : vector<8x32xf32>, vector<32x128xf32>, vector<8x128xf32> -> vector<8x128xf32>
    %28 = arith.addf %26, %27 : vector<8x128xf32>
    %29 = math.tanh %28 : vector<8x128xf32>
    %cst_13 = arith.constant 5.000000e-01 : f32
    %30 = vector.broadcast %cst_13 : f32 to vector<8x128xf32>
    %31 = arith.mulf %30, %29 : vector<8x128xf32>
    %cst_14 = arith.constant 5.000000e-01 : f32
    %32 = vector.broadcast %cst_14 : f32 to vector<8x128xf32>
    %33 = arith.addf %31, %32 : vector<8x128xf32>
    %34 = vector.extract_strided_slice %33 {offsets = [0, 0], sizes = [8, 32], strides = [1, 1]} : vector<8x128xf32> to vector<8x32xf32>
    %35 = vector.extract_strided_slice %33 {offsets = [0, 32], sizes = [8, 32], strides = [1, 1]} : vector<8x128xf32> to vector<8x32xf32>
    %36 = vector.extract_strided_slice %29 {offsets = [0, 64], sizes = [8, 32], strides = [1, 1]} : vector<8x128xf32> to vector<8x32xf32>
    %37 = vector.extract_strided_slice %33 {offsets = [0, 96], sizes = [8, 32], strides = [1, 1]} : vector<8x128xf32> to vector<8x32xf32>
    %38 = arith.mulf %35, %23 : vector<8x32xf32>
    %39 = arith.mulf %34, %36 : vector<8x32xf32>
    %40 = arith.addf %38, %39 : vector<8x32xf32>
    %41 = math.tanh %40 : vector<8x32xf32>
    %42 = arith.mulf %37, %41 : vector<8x32xf32>
    %43 = vector.extract_strided_slice %6 {offsets = [16, 0], sizes = [8, 128], strides = [1, 1]} : vector<64x128xf32> to vector<8x128xf32>
    %cst_15 = arith.constant dense<0.000000e+00> : vector<8x128xf32>
    %44 = tpu.matmul %42, %2, %cst_15 {dimension_numbers = #tpu.dot_dimension_numbers<[1], [0], [0], [1], [0, 0, 1, 1], [], []>} : vector<8x32xf32>, vector<32x128xf32>, vector<8x128xf32> -> vector<8x128xf32>
    %45 = arith.addf %43, %44 : vector<8x128xf32>
    %46 = math.tanh %45 : vector<8x128xf32>
    %cst_16 = arith.constant 5.000000e-01 : f32
    %47 = vector.broadcast %cst_16 : f32 to vector<8x128xf32>
    %48 = arith.mulf %47, %46 : vector<8x128xf32>
    %cst_17 = arith.constant 5.000000e-01 : f32
    %49 = vector.broadcast %cst_17 : f32 to vector<8x128xf32>
    %50 = arith.addf %48, %49 : vector<8x128xf32>
    %51 = vector.extract_strided_slice %50 {offsets = [0, 0], sizes = [8, 32], strides = [1, 1]} : vector<8x128xf32> to vector<8x32xf32>
    %52 = vector.extract_strided_slice %50 {offsets = [0, 32], sizes = [8, 32], strides = [1, 1]} : vector<8x128xf32> to vector<8x32xf32>
    %53 = vector.extract_strided_slice %46 {offsets = [0, 64], sizes = [8, 32], strides = [1, 1]} : vector<8x128xf32> to vector<8x32xf32>
    %54 = vector.extract_strided_slice %50 {offsets = [0, 96], sizes = [8, 32], strides = [1, 1]} : vector<8x128xf32> to vector<8x32xf32>
    %55 = arith.mulf %52, %40 : vector<8x32xf32>
    %56 = arith.mulf %51, %53 : vector<8x32xf32>
    %57 = arith.addf %55, %56 : vector<8x32xf32>
    %58 = math.tanh %57 : vector<8x32xf32>
    %59 = arith.mulf %54, %58 : vector<8x32xf32>
    %60 = vector.extract_strided_slice %6 {offsets = [24, 0], sizes = [8, 128], strides = [1, 1]} : vector<64x128xf32> to vector<8x128xf32>
    %cst_18 = arith.constant dense<0.000000e+00> : vector<8x128xf32>
    %61 = tpu.matmul %59, %2, %cst_18 {dimension_numbers = #tpu.dot_dimension_numbers<[1], [0], [0], [1], [0, 0, 1, 1], [], []>} : vector<8x32xf32>, vector<32x128xf32>, vector<8x128xf32> -> vector<8x128xf32>
    %62 = arith.addf %60, %61 : vector<8x128xf32>
    %63 = math.tanh %62 : vector<8x128xf32>
    %cst_19 = arith.constant 5.000000e-01 : f32
    %64 = vector.broadcast %cst_19 : f32 to vector<8x128xf32>
    %65 = arith.mulf %64, %63 : vector<8x128xf32>
    %cst_20 = arith.constant 5.000000e-01 : f32
    %66 = vector.broadcast %cst_20 : f32 to vector<8x128xf32>
    %67 = arith.addf %65, %66 : vector<8x128xf32>
    %68 = vector.extract_strided_slice %67 {offsets = [0, 0], sizes = [8, 32], strides = [1, 1]} : vector<8x128xf32> to vector<8x32xf32>
    %69 = vector.extract_strided_slice %67 {offsets = [0, 32], sizes = [8, 32], strides = [1, 1]} : vector<8x128xf32> to vector<8x32xf32>
    %70 = vector.extract_strided_slice %63 {offsets = [0, 64], sizes = [8, 32], strides = [1, 1]} : vector<8x128xf32> to vector<8x32xf32>
    %71 = vector.extract_strided_slice %67 {offsets = [0, 96], sizes = [8, 32], strides = [1, 1]} : vector<8x128xf32> to vector<8x32xf32>
    %72 = arith.mulf %69, %57 : vector<8x32xf32>
    %73 = arith.mulf %68, %70 : vector<8x32xf32>
    %74 = arith.addf %72, %73 : vector<8x32xf32>
    %75 = math.tanh %74 : vector<8x32xf32>
    %76 = arith.mulf %71, %75 : vector<8x32xf32>
    %77 = vector.extract_strided_slice %6 {offsets = [32, 0], sizes = [8, 128], strides = [1, 1]} : vector<64x128xf32> to vector<8x128xf32>
    %cst_21 = arith.constant dense<0.000000e+00> : vector<8x128xf32>
    %78 = tpu.matmul %76, %2, %cst_21 {dimension_numbers = #tpu.dot_dimension_numbers<[1], [0], [0], [1], [0, 0, 1, 1], [], []>} : vector<8x32xf32>, vector<32x128xf32>, vector<8x128xf32> -> vector<8x128xf32>
    %79 = arith.addf %77, %78 : vector<8x128xf32>
    %80 = math.tanh %79 : vector<8x128xf32>
    %cst_22 = arith.constant 5.000000e-01 : f32
    %81 = vector.broadcast %cst_22 : f32 to vector<8x128xf32>
    %82 = arith.mulf %81, %80 : vector<8x128xf32>
    %cst_23 = arith.constant 5.000000e-01 : f32
    %83 = vector.broadcast %cst_23 : f32 to vector<8x128xf32>
    %84 = arith.addf %82, %83 : vector<8x128xf32>
    %85 = vector.extract_strided_slice %84 {offsets = [0, 0], sizes = [8, 32], strides = [1, 1]} : vector<8x128xf32> to vector<8x32xf32>
    %86 = vector.extract_strided_slice %84 {offsets = [0, 32], sizes = [8, 32], strides = [1, 1]} : vector<8x128xf32> to vector<8x32xf32>
    %87 = vector.extract_strided_slice %80 {offsets = [0, 64], sizes = [8, 32], strides = [1, 1]} : vector<8x128xf32> to vector<8x32xf32>
    %88 = vector.extract_strided_slice %84 {offsets = [0, 96], sizes = [8, 32], strides = [1, 1]} : vector<8x128xf32> to vector<8x32xf32>
    %89 = arith.mulf %86, %74 : vector<8x32xf32>
    %90 = arith.mulf %85, %87 : vector<8x32xf32>
    %91 = arith.addf %89, %90 : vector<8x32xf32>
    %92 = math.tanh %91 : vector<8x32xf32>
    %93 = arith.mulf %88, %92 : vector<8x32xf32>
    %94 = vector.extract_strided_slice %6 {offsets = [40, 0], sizes = [8, 128], strides = [1, 1]} : vector<64x128xf32> to vector<8x128xf32>
    %cst_24 = arith.constant dense<0.000000e+00> : vector<8x128xf32>
    %95 = tpu.matmul %93, %2, %cst_24 {dimension_numbers = #tpu.dot_dimension_numbers<[1], [0], [0], [1], [0, 0, 1, 1], [], []>} : vector<8x32xf32>, vector<32x128xf32>, vector<8x128xf32> -> vector<8x128xf32>
    %96 = arith.addf %94, %95 : vector<8x128xf32>
    %97 = math.tanh %96 : vector<8x128xf32>
    %cst_25 = arith.constant 5.000000e-01 : f32
    %98 = vector.broadcast %cst_25 : f32 to vector<8x128xf32>
    %99 = arith.mulf %98, %97 : vector<8x128xf32>
    %cst_26 = arith.constant 5.000000e-01 : f32
    %100 = vector.broadcast %cst_26 : f32 to vector<8x128xf32>
    %101 = arith.addf %99, %100 : vector<8x128xf32>
    %102 = vector.extract_strided_slice %101 {offsets = [0, 0], sizes = [8, 32], strides = [1, 1]} : vector<8x128xf32> to vector<8x32xf32>
    %103 = vector.extract_strided_slice %101 {offsets = [0, 32], sizes = [8, 32], strides = [1, 1]} : vector<8x128xf32> to vector<8x32xf32>
    %104 = vector.extract_strided_slice %97 {offsets = [0, 64], sizes = [8, 32], strides = [1, 1]} : vector<8x128xf32> to vector<8x32xf32>
    %105 = vector.extract_strided_slice %101 {offsets = [0, 96], sizes = [8, 32], strides = [1, 1]} : vector<8x128xf32> to vector<8x32xf32>
    %106 = arith.mulf %103, %91 : vector<8x32xf32>
    %107 = arith.mulf %102, %104 : vector<8x32xf32>
    %108 = arith.addf %106, %107 : vector<8x32xf32>
    %109 = math.tanh %108 : vector<8x32xf32>
    %110 = arith.mulf %105, %109 : vector<8x32xf32>
    %111 = vector.extract_strided_slice %6 {offsets = [48, 0], sizes = [8, 128], strides = [1, 1]} : vector<64x128xf32> to vector<8x128xf32>
    %cst_27 = arith.constant dense<0.000000e+00> : vector<8x128xf32>
    %112 = tpu.matmul %110, %2, %cst_27 {dimension_numbers = #tpu.dot_dimension_numbers<[1], [0], [0], [1], [0, 0, 1, 1], [], []>} : vector<8x32xf32>, vector<32x128xf32>, vector<8x128xf32> -> vector<8x128xf32>
    %113 = arith.addf %111, %112 : vector<8x128xf32>
    %114 = math.tanh %113 : vector<8x128xf32>
    %cst_28 = arith.constant 5.000000e-01 : f32
    %115 = vector.broadcast %cst_28 : f32 to vector<8x128xf32>
    %116 = arith.mulf %115, %114 : vector<8x128xf32>
    %cst_29 = arith.constant 5.000000e-01 : f32
    %117 = vector.broadcast %cst_29 : f32 to vector<8x128xf32>
    %118 = arith.addf %116, %117 : vector<8x128xf32>
    %119 = vector.extract_strided_slice %118 {offsets = [0, 0], sizes = [8, 32], strides = [1, 1]} : vector<8x128xf32> to vector<8x32xf32>
    %120 = vector.extract_strided_slice %118 {offsets = [0, 32], sizes = [8, 32], strides = [1, 1]} : vector<8x128xf32> to vector<8x32xf32>
    %121 = vector.extract_strided_slice %114 {offsets = [0, 64], sizes = [8, 32], strides = [1, 1]} : vector<8x128xf32> to vector<8x32xf32>
    %122 = vector.extract_strided_slice %118 {offsets = [0, 96], sizes = [8, 32], strides = [1, 1]} : vector<8x128xf32> to vector<8x32xf32>
    %123 = arith.mulf %120, %108 : vector<8x32xf32>
    %124 = arith.mulf %119, %121 : vector<8x32xf32>
    %125 = arith.addf %123, %124 : vector<8x32xf32>
    %126 = math.tanh %125 : vector<8x32xf32>
    %127 = arith.mulf %122, %126 : vector<8x32xf32>
    %128 = vector.extract_strided_slice %6 {offsets = [56, 0], sizes = [8, 128], strides = [1, 1]} : vector<64x128xf32> to vector<8x128xf32>
    %cst_30 = arith.constant dense<0.000000e+00> : vector<8x128xf32>
    %129 = tpu.matmul %127, %2, %cst_30 {dimension_numbers = #tpu.dot_dimension_numbers<[1], [0], [0], [1], [0, 0, 1, 1], [], []>} : vector<8x32xf32>, vector<32x128xf32>, vector<8x128xf32> -> vector<8x128xf32>
    %130 = arith.addf %128, %129 : vector<8x128xf32>
    %131 = math.tanh %130 : vector<8x128xf32>
    %cst_31 = arith.constant 5.000000e-01 : f32
    %132 = vector.broadcast %cst_31 : f32 to vector<8x128xf32>
    %133 = arith.mulf %132, %131 : vector<8x128xf32>
    %cst_32 = arith.constant 5.000000e-01 : f32
    %134 = vector.broadcast %cst_32 : f32 to vector<8x128xf32>
    %135 = arith.addf %133, %134 : vector<8x128xf32>
    %136 = vector.extract_strided_slice %135 {offsets = [0, 0], sizes = [8, 32], strides = [1, 1]} : vector<8x128xf32> to vector<8x32xf32>
    %137 = vector.extract_strided_slice %135 {offsets = [0, 32], sizes = [8, 32], strides = [1, 1]} : vector<8x128xf32> to vector<8x32xf32>
    %138 = vector.extract_strided_slice %131 {offsets = [0, 64], sizes = [8, 32], strides = [1, 1]} : vector<8x128xf32> to vector<8x32xf32>
    %139 = vector.extract_strided_slice %135 {offsets = [0, 96], sizes = [8, 32], strides = [1, 1]} : vector<8x128xf32> to vector<8x32xf32>
    %140 = arith.mulf %137, %125 : vector<8x32xf32>
    %141 = arith.mulf %136, %138 : vector<8x32xf32>
    %142 = arith.addf %140, %141 : vector<8x32xf32>
    %143 = math.tanh %142 : vector<8x32xf32>
    %144 = arith.mulf %139, %143 : vector<8x32xf32>
    %145 = tpu.concatenate %25, %42, %59, %76, %93, %110, %127, %144 in 0 : vector<8x32xf32>, vector<8x32xf32>, vector<8x32xf32>, vector<8x32xf32>, vector<8x32xf32>, vector<8x32xf32>, vector<8x32xf32>, vector<8x32xf32> -> vector<64x32xf32>
    %c0_33 = arith.constant 0 : index
    %c0_34 = arith.constant 0 : index
    %146 = vector.load %arg4[%c0_33, %c0_34] : memref<32x128xf32, #tpu.memory_space<vmem>>, vector<32x128xf32>
    %c0_35 = arith.constant 0 : index
    %c0_36 = arith.constant 0 : index
    %147 = vector.load %arg5[%c0_35, %c0_36] : memref<32x128xf32, #tpu.memory_space<vmem>>, vector<32x128xf32>
    %c0_37 = arith.constant 0 : index
    %c0_38 = arith.constant 0 : index
    %148 = vector.load %arg6[%c0_37, %c0_38] : memref<1x128xf32, #tpu.memory_space<vmem>>, vector<1x128xf32>
    %cst_39 = arith.constant dense<0.000000e+00> : vector<64x128xf32>
    %149 = tpu.matmul %145, %146, %cst_39 {dimension_numbers = #tpu.dot_dimension_numbers<[1], [0], [0], [1], [0, 0, 1, 1], [], []>} : vector<64x32xf32>, vector<32x128xf32>, vector<64x128xf32> -> vector<64x128xf32>
    %150 = vector.broadcast %148 : vector<1x128xf32> to vector<64x128xf32>
    %151 = arith.addf %149, %150 : vector<64x128xf32>
    %cst_40 = arith.constant 0.000000e+00 : f32
    %152 = vector.broadcast %cst_40 : f32 to vector<8x32xf32>
    %cst_41 = arith.constant 0.000000e+00 : f32
    %153 = vector.broadcast %cst_41 : f32 to vector<8x32xf32>
    %154 = vector.extract_strided_slice %151 {offsets = [0, 0], sizes = [8, 128], strides = [1, 1]} : vector<64x128xf32> to vector<8x128xf32>
    %cst_42 = arith.constant dense<0.000000e+00> : vector<8x128xf32>
    %155 = tpu.matmul %152, %147, %cst_42 {dimension_numbers = #tpu.dot_dimension_numbers<[1], [0], [0], [1], [0, 0, 1, 1], [], []>} : vector<8x32xf32>, vector<32x128xf32>, vector<8x128xf32> -> vector<8x128xf32>
    %156 = arith.addf %154, %155 : vector<8x128xf32>
    %157 = math.tanh %156 : vector<8x128xf32>
    %cst_43 = arith.constant 5.000000e-01 : f32
    %158 = vector.broadcast %cst_43 : f32 to vector<8x128xf32>
    %159 = arith.mulf %158, %157 : vector<8x128xf32>
    %cst_44 = arith.constant 5.000000e-01 : f32
    %160 = vector.broadcast %cst_44 : f32 to vector<8x128xf32>
    %161 = arith.addf %159, %160 : vector<8x128xf32>
    %162 = vector.extract_strided_slice %161 {offsets = [0, 0], sizes = [8, 32], strides = [1, 1]} : vector<8x128xf32> to vector<8x32xf32>
    %163 = vector.extract_strided_slice %161 {offsets = [0, 32], sizes = [8, 32], strides = [1, 1]} : vector<8x128xf32> to vector<8x32xf32>
    %164 = vector.extract_strided_slice %157 {offsets = [0, 64], sizes = [8, 32], strides = [1, 1]} : vector<8x128xf32> to vector<8x32xf32>
    %165 = vector.extract_strided_slice %161 {offsets = [0, 96], sizes = [8, 32], strides = [1, 1]} : vector<8x128xf32> to vector<8x32xf32>
    %166 = arith.mulf %163, %153 : vector<8x32xf32>
    %167 = arith.mulf %162, %164 : vector<8x32xf32>
    %168 = arith.addf %166, %167 : vector<8x32xf32>
    %169 = math.tanh %168 : vector<8x32xf32>
    %170 = arith.mulf %165, %169 : vector<8x32xf32>
    %171 = vector.extract_strided_slice %151 {offsets = [8, 0], sizes = [8, 128], strides = [1, 1]} : vector<64x128xf32> to vector<8x128xf32>
    %cst_45 = arith.constant dense<0.000000e+00> : vector<8x128xf32>
    %172 = tpu.matmul %170, %147, %cst_45 {dimension_numbers = #tpu.dot_dimension_numbers<[1], [0], [0], [1], [0, 0, 1, 1], [], []>} : vector<8x32xf32>, vector<32x128xf32>, vector<8x128xf32> -> vector<8x128xf32>
    %173 = arith.addf %171, %172 : vector<8x128xf32>
    %174 = math.tanh %173 : vector<8x128xf32>
    %cst_46 = arith.constant 5.000000e-01 : f32
    %175 = vector.broadcast %cst_46 : f32 to vector<8x128xf32>
    %176 = arith.mulf %175, %174 : vector<8x128xf32>
    %cst_47 = arith.constant 5.000000e-01 : f32
    %177 = vector.broadcast %cst_47 : f32 to vector<8x128xf32>
    %178 = arith.addf %176, %177 : vector<8x128xf32>
    %179 = vector.extract_strided_slice %178 {offsets = [0, 0], sizes = [8, 32], strides = [1, 1]} : vector<8x128xf32> to vector<8x32xf32>
    %180 = vector.extract_strided_slice %178 {offsets = [0, 32], sizes = [8, 32], strides = [1, 1]} : vector<8x128xf32> to vector<8x32xf32>
    %181 = vector.extract_strided_slice %174 {offsets = [0, 64], sizes = [8, 32], strides = [1, 1]} : vector<8x128xf32> to vector<8x32xf32>
    %182 = vector.extract_strided_slice %178 {offsets = [0, 96], sizes = [8, 32], strides = [1, 1]} : vector<8x128xf32> to vector<8x32xf32>
    %183 = arith.mulf %180, %168 : vector<8x32xf32>
    %184 = arith.mulf %179, %181 : vector<8x32xf32>
    %185 = arith.addf %183, %184 : vector<8x32xf32>
    %186 = math.tanh %185 : vector<8x32xf32>
    %187 = arith.mulf %182, %186 : vector<8x32xf32>
    %188 = vector.extract_strided_slice %151 {offsets = [16, 0], sizes = [8, 128], strides = [1, 1]} : vector<64x128xf32> to vector<8x128xf32>
    %cst_48 = arith.constant dense<0.000000e+00> : vector<8x128xf32>
    %189 = tpu.matmul %187, %147, %cst_48 {dimension_numbers = #tpu.dot_dimension_numbers<[1], [0], [0], [1], [0, 0, 1, 1], [], []>} : vector<8x32xf32>, vector<32x128xf32>, vector<8x128xf32> -> vector<8x128xf32>
    %190 = arith.addf %188, %189 : vector<8x128xf32>
    %191 = math.tanh %190 : vector<8x128xf32>
    %cst_49 = arith.constant 5.000000e-01 : f32
    %192 = vector.broadcast %cst_49 : f32 to vector<8x128xf32>
    %193 = arith.mulf %192, %191 : vector<8x128xf32>
    %cst_50 = arith.constant 5.000000e-01 : f32
    %194 = vector.broadcast %cst_50 : f32 to vector<8x128xf32>
    %195 = arith.addf %193, %194 : vector<8x128xf32>
    %196 = vector.extract_strided_slice %195 {offsets = [0, 0], sizes = [8, 32], strides = [1, 1]} : vector<8x128xf32> to vector<8x32xf32>
    %197 = vector.extract_strided_slice %195 {offsets = [0, 32], sizes = [8, 32], strides = [1, 1]} : vector<8x128xf32> to vector<8x32xf32>
    %198 = vector.extract_strided_slice %191 {offsets = [0, 64], sizes = [8, 32], strides = [1, 1]} : vector<8x128xf32> to vector<8x32xf32>
    %199 = vector.extract_strided_slice %195 {offsets = [0, 96], sizes = [8, 32], strides = [1, 1]} : vector<8x128xf32> to vector<8x32xf32>
    %200 = arith.mulf %197, %185 : vector<8x32xf32>
    %201 = arith.mulf %196, %198 : vector<8x32xf32>
    %202 = arith.addf %200, %201 : vector<8x32xf32>
    %203 = math.tanh %202 : vector<8x32xf32>
    %204 = arith.mulf %199, %203 : vector<8x32xf32>
    %205 = vector.extract_strided_slice %151 {offsets = [24, 0], sizes = [8, 128], strides = [1, 1]} : vector<64x128xf32> to vector<8x128xf32>
    %cst_51 = arith.constant dense<0.000000e+00> : vector<8x128xf32>
    %206 = tpu.matmul %204, %147, %cst_51 {dimension_numbers = #tpu.dot_dimension_numbers<[1], [0], [0], [1], [0, 0, 1, 1], [], []>} : vector<8x32xf32>, vector<32x128xf32>, vector<8x128xf32> -> vector<8x128xf32>
    %207 = arith.addf %205, %206 : vector<8x128xf32>
    %208 = math.tanh %207 : vector<8x128xf32>
    %cst_52 = arith.constant 5.000000e-01 : f32
    %209 = vector.broadcast %cst_52 : f32 to vector<8x128xf32>
    %210 = arith.mulf %209, %208 : vector<8x128xf32>
    %cst_53 = arith.constant 5.000000e-01 : f32
    %211 = vector.broadcast %cst_53 : f32 to vector<8x128xf32>
    %212 = arith.addf %210, %211 : vector<8x128xf32>
    %213 = vector.extract_strided_slice %212 {offsets = [0, 0], sizes = [8, 32], strides = [1, 1]} : vector<8x128xf32> to vector<8x32xf32>
    %214 = vector.extract_strided_slice %212 {offsets = [0, 32], sizes = [8, 32], strides = [1, 1]} : vector<8x128xf32> to vector<8x32xf32>
    %215 = vector.extract_strided_slice %208 {offsets = [0, 64], sizes = [8, 32], strides = [1, 1]} : vector<8x128xf32> to vector<8x32xf32>
    %216 = vector.extract_strided_slice %212 {offsets = [0, 96], sizes = [8, 32], strides = [1, 1]} : vector<8x128xf32> to vector<8x32xf32>
    %217 = arith.mulf %214, %202 : vector<8x32xf32>
    %218 = arith.mulf %213, %215 : vector<8x32xf32>
    %219 = arith.addf %217, %218 : vector<8x32xf32>
    %220 = math.tanh %219 : vector<8x32xf32>
    %221 = arith.mulf %216, %220 : vector<8x32xf32>
    %222 = vector.extract_strided_slice %151 {offsets = [32, 0], sizes = [8, 128], strides = [1, 1]} : vector<64x128xf32> to vector<8x128xf32>
    %cst_54 = arith.constant dense<0.000000e+00> : vector<8x128xf32>
    %223 = tpu.matmul %221, %147, %cst_54 {dimension_numbers = #tpu.dot_dimension_numbers<[1], [0], [0], [1], [0, 0, 1, 1], [], []>} : vector<8x32xf32>, vector<32x128xf32>, vector<8x128xf32> -> vector<8x128xf32>
    %224 = arith.addf %222, %223 : vector<8x128xf32>
    %225 = math.tanh %224 : vector<8x128xf32>
    %cst_55 = arith.constant 5.000000e-01 : f32
    %226 = vector.broadcast %cst_55 : f32 to vector<8x128xf32>
    %227 = arith.mulf %226, %225 : vector<8x128xf32>
    %cst_56 = arith.constant 5.000000e-01 : f32
    %228 = vector.broadcast %cst_56 : f32 to vector<8x128xf32>
    %229 = arith.addf %227, %228 : vector<8x128xf32>
    %230 = vector.extract_strided_slice %229 {offsets = [0, 0], sizes = [8, 32], strides = [1, 1]} : vector<8x128xf32> to vector<8x32xf32>
    %231 = vector.extract_strided_slice %229 {offsets = [0, 32], sizes = [8, 32], strides = [1, 1]} : vector<8x128xf32> to vector<8x32xf32>
    %232 = vector.extract_strided_slice %225 {offsets = [0, 64], sizes = [8, 32], strides = [1, 1]} : vector<8x128xf32> to vector<8x32xf32>
    %233 = vector.extract_strided_slice %229 {offsets = [0, 96], sizes = [8, 32], strides = [1, 1]} : vector<8x128xf32> to vector<8x32xf32>
    %234 = arith.mulf %231, %219 : vector<8x32xf32>
    %235 = arith.mulf %230, %232 : vector<8x32xf32>
    %236 = arith.addf %234, %235 : vector<8x32xf32>
    %237 = math.tanh %236 : vector<8x32xf32>
    %238 = arith.mulf %233, %237 : vector<8x32xf32>
    %239 = vector.extract_strided_slice %151 {offsets = [40, 0], sizes = [8, 128], strides = [1, 1]} : vector<64x128xf32> to vector<8x128xf32>
    %cst_57 = arith.constant dense<0.000000e+00> : vector<8x128xf32>
    %240 = tpu.matmul %238, %147, %cst_57 {dimension_numbers = #tpu.dot_dimension_numbers<[1], [0], [0], [1], [0, 0, 1, 1], [], []>} : vector<8x32xf32>, vector<32x128xf32>, vector<8x128xf32> -> vector<8x128xf32>
    %241 = arith.addf %239, %240 : vector<8x128xf32>
    %242 = math.tanh %241 : vector<8x128xf32>
    %cst_58 = arith.constant 5.000000e-01 : f32
    %243 = vector.broadcast %cst_58 : f32 to vector<8x128xf32>
    %244 = arith.mulf %243, %242 : vector<8x128xf32>
    %cst_59 = arith.constant 5.000000e-01 : f32
    %245 = vector.broadcast %cst_59 : f32 to vector<8x128xf32>
    %246 = arith.addf %244, %245 : vector<8x128xf32>
    %247 = vector.extract_strided_slice %246 {offsets = [0, 0], sizes = [8, 32], strides = [1, 1]} : vector<8x128xf32> to vector<8x32xf32>
    %248 = vector.extract_strided_slice %246 {offsets = [0, 32], sizes = [8, 32], strides = [1, 1]} : vector<8x128xf32> to vector<8x32xf32>
    %249 = vector.extract_strided_slice %242 {offsets = [0, 64], sizes = [8, 32], strides = [1, 1]} : vector<8x128xf32> to vector<8x32xf32>
    %250 = vector.extract_strided_slice %246 {offsets = [0, 96], sizes = [8, 32], strides = [1, 1]} : vector<8x128xf32> to vector<8x32xf32>
    %251 = arith.mulf %248, %236 : vector<8x32xf32>
    %252 = arith.mulf %247, %249 : vector<8x32xf32>
    %253 = arith.addf %251, %252 : vector<8x32xf32>
    %254 = math.tanh %253 : vector<8x32xf32>
    %255 = arith.mulf %250, %254 : vector<8x32xf32>
    %256 = vector.extract_strided_slice %151 {offsets = [48, 0], sizes = [8, 128], strides = [1, 1]} : vector<64x128xf32> to vector<8x128xf32>
    %cst_60 = arith.constant dense<0.000000e+00> : vector<8x128xf32>
    %257 = tpu.matmul %255, %147, %cst_60 {dimension_numbers = #tpu.dot_dimension_numbers<[1], [0], [0], [1], [0, 0, 1, 1], [], []>} : vector<8x32xf32>, vector<32x128xf32>, vector<8x128xf32> -> vector<8x128xf32>
    %258 = arith.addf %256, %257 : vector<8x128xf32>
    %259 = math.tanh %258 : vector<8x128xf32>
    %cst_61 = arith.constant 5.000000e-01 : f32
    %260 = vector.broadcast %cst_61 : f32 to vector<8x128xf32>
    %261 = arith.mulf %260, %259 : vector<8x128xf32>
    %cst_62 = arith.constant 5.000000e-01 : f32
    %262 = vector.broadcast %cst_62 : f32 to vector<8x128xf32>
    %263 = arith.addf %261, %262 : vector<8x128xf32>
    %264 = vector.extract_strided_slice %263 {offsets = [0, 0], sizes = [8, 32], strides = [1, 1]} : vector<8x128xf32> to vector<8x32xf32>
    %265 = vector.extract_strided_slice %263 {offsets = [0, 32], sizes = [8, 32], strides = [1, 1]} : vector<8x128xf32> to vector<8x32xf32>
    %266 = vector.extract_strided_slice %259 {offsets = [0, 64], sizes = [8, 32], strides = [1, 1]} : vector<8x128xf32> to vector<8x32xf32>
    %267 = vector.extract_strided_slice %263 {offsets = [0, 96], sizes = [8, 32], strides = [1, 1]} : vector<8x128xf32> to vector<8x32xf32>
    %268 = arith.mulf %265, %253 : vector<8x32xf32>
    %269 = arith.mulf %264, %266 : vector<8x32xf32>
    %270 = arith.addf %268, %269 : vector<8x32xf32>
    %271 = math.tanh %270 : vector<8x32xf32>
    %272 = arith.mulf %267, %271 : vector<8x32xf32>
    %273 = vector.extract_strided_slice %151 {offsets = [56, 0], sizes = [8, 128], strides = [1, 1]} : vector<64x128xf32> to vector<8x128xf32>
    %cst_63 = arith.constant dense<0.000000e+00> : vector<8x128xf32>
    %274 = tpu.matmul %272, %147, %cst_63 {dimension_numbers = #tpu.dot_dimension_numbers<[1], [0], [0], [1], [0, 0, 1, 1], [], []>} : vector<8x32xf32>, vector<32x128xf32>, vector<8x128xf32> -> vector<8x128xf32>
    %275 = arith.addf %273, %274 : vector<8x128xf32>
    %276 = math.tanh %275 : vector<8x128xf32>
    %cst_64 = arith.constant 5.000000e-01 : f32
    %277 = vector.broadcast %cst_64 : f32 to vector<8x128xf32>
    %278 = arith.mulf %277, %276 : vector<8x128xf32>
    %cst_65 = arith.constant 5.000000e-01 : f32
    %279 = vector.broadcast %cst_65 : f32 to vector<8x128xf32>
    %280 = arith.addf %278, %279 : vector<8x128xf32>
    %281 = vector.extract_strided_slice %280 {offsets = [0, 0], sizes = [8, 32], strides = [1, 1]} : vector<8x128xf32> to vector<8x32xf32>
    %282 = vector.extract_strided_slice %280 {offsets = [0, 32], sizes = [8, 32], strides = [1, 1]} : vector<8x128xf32> to vector<8x32xf32>
    %283 = vector.extract_strided_slice %276 {offsets = [0, 64], sizes = [8, 32], strides = [1, 1]} : vector<8x128xf32> to vector<8x32xf32>
    %284 = vector.extract_strided_slice %280 {offsets = [0, 96], sizes = [8, 32], strides = [1, 1]} : vector<8x128xf32> to vector<8x32xf32>
    %285 = arith.mulf %282, %270 : vector<8x32xf32>
    %286 = arith.mulf %281, %283 : vector<8x32xf32>
    %287 = arith.addf %285, %286 : vector<8x32xf32>
    %288 = math.tanh %287 : vector<8x32xf32>
    %289 = arith.mulf %284, %288 : vector<8x32xf32>
    %c0_66 = arith.constant 0 : index
    %c0_67 = arith.constant 0 : index
    %290 = vector.load %arg7[%c0_66, %c0_67] : memref<32x128xf32, #tpu.memory_space<vmem>>, vector<32x128xf32>
    %cst_68 = arith.constant dense<0.000000e+00> : vector<8x128xf32>
    %291 = tpu.matmul %289, %290, %cst_68 {dimension_numbers = #tpu.dot_dimension_numbers<[1], [0], [0], [1], [0, 0, 1, 1], [], []>} : vector<8x32xf32>, vector<32x128xf32>, vector<8x128xf32> -> vector<8x128xf32>
    %c0_69 = arith.constant 0 : index
    %c0_70 = arith.constant 0 : index
    %292 = vector.load %arg8[%c0_69, %c0_70] : memref<1x128xf32, #tpu.memory_space<vmem>>, vector<1x128xf32>
    %293 = vector.broadcast %292 : vector<1x128xf32> to vector<8x128xf32>
    %294 = arith.addf %291, %293 : vector<8x128xf32>
    %cst_71 = arith.constant dense<0xFF800000> : vector<8xf32>
    %295 = vector.multi_reduction <maximumf>, %294, %cst_71 [1] : vector<8x128xf32> to vector<8xf32>
    %296 = vector.shape_cast %295 : vector<8xf32> to vector<8x1xf32>
    %297 = vector.broadcast %296 : vector<8x1xf32> to vector<8x128xf32>
    %298 = arith.subf %294, %297 : vector<8x128xf32>
    %299 = math.exp %298 : vector<8x128xf32>
    %cst_72 = arith.constant dense<0.000000e+00> : vector<8xf32>
    %300 = vector.multi_reduction <add>, %299, %cst_72 [1] : vector<8x128xf32> to vector<8xf32>
    %301 = vector.shape_cast %300 : vector<8xf32> to vector<8x1xf32>
    %302 = math.log %301 : vector<8x1xf32>
    %303 = vector.broadcast %302 : vector<8x1xf32> to vector<8x128xf32>
    %304 = arith.subf %298, %303 : vector<8x128xf32>
    %c0_73 = arith.constant 0 : index
    %c0_74 = arith.constant 0 : index
    %305 = vector.load %arg9[%c0_73, %c0_74] : memref<8x128xf32, #tpu.memory_space<vmem>>, vector<8x128xf32>
    tpu.vector_store %arg9[%c0_73, %c0_74], %304 {strides = array<i32>} : memref<8x128xf32, #tpu.memory_space<vmem>>, vector<8x128xf32>,
    return
  }
}

</mosaic_0001>

<llo_original>
// kernel: lstm_keyword_spotter_forward.1
$region0: #{lstm_keyword_spotter_forward.1}
  #allocation0 [shape = 'u32[]', space=smem, size = 0x4, offset = 0x4, fixed_abs, tag = 'smem constant byte address 0x4 - core index']
  #allocation1 [shape = 'u32[144,128]{1,0:T(1,128)}', space=vmem, size = 0x12000, scoped, tag = 'internal scratch']
  %s0 = inlined_call_operand.vmem [shape: f32[64,16], index: 0, kind: input, shape index: {}]
  %s1 = inlined_call_operand.vmem [shape: f32[16,128], index: 1, kind: input, shape index: {}]
  %s2 = inlined_call_operand.vmem [shape: f32[32,128], index: 2, kind: input, shape index: {}]
  %s3 = inlined_call_operand.vmem [shape: f32[1,128], index: 3, kind: input, shape index: {}]
  %s4 = inlined_call_operand.vmem [shape: f32[32,128], index: 4, kind: input, shape index: {}]
  %s5 = inlined_call_operand.vmem [shape: f32[32,128], index: 5, kind: input, shape index: {}]
  %s6 = inlined_call_operand.vmem [shape: f32[1,128], index: 6, kind: input, shape index: {}]
  %s7 = inlined_call_operand.vmem [shape: f32[32,128], index: 7, kind: input, shape index: {}]
  %s8 = inlined_call_operand.vmem [shape: f32[1,128], index: 8, kind: input, shape index: {}]
  %s9 = inlined_call_operand.vmem [shape: f32[8,128], index: 9, kind: output, shape index: {}]
  %s10 = sld [smem:[#allocation0]]
  $region46: #{lstm_keyword_spotter_forward.1} parent=0
    _
  %s12 = ssub.s32 1, %s10
  %s13 = scalar_select 0, %s12, %s10
  // Predicated region
  $region2: #{lstm_keyword_spotter_forward.1} parent=0 // pred_check
    _
  $region3: #{lstm_keyword_spotter_forward.1} parent=0 // pred_check_branch
    %15 = sbr.rel (0) target = $region5
  $region4: #{lstm_keyword_spotter_forward.1} parent=0 // pred_region
    _
  $region5: #{lstm_keyword_spotter_forward.1} parent=0 // pred_fallthru
    _
  // Predicated region
  $region6: #{lstm_keyword_spotter_forward.1} parent=0 // pred_check
    _
  $region7: #{lstm_keyword_spotter_forward.1} parent=0 // pred_check_branch
    %17 = sbr.rel (0) target = $region9
  $region8: #{lstm_keyword_spotter_forward.1} parent=0 // pred_region
    _
  $region9: #{lstm_keyword_spotter_forward.1} parent=0 // pred_fallthru
    _
  // Predicated region
  $region10: #{lstm_keyword_spotter_forward.1} parent=0 // pred_check
    _
  $region11: #{lstm_keyword_spotter_forward.1} parent=0 // pred_check_branch
    %19 = sbr.rel (0) target = $region13
  $region12: #{lstm_keyword_spotter_forward.1} parent=0 // pred_region
    _
  $region13: #{lstm_keyword_spotter_forward.1} parent=0 // pred_fallthru
    _
  // Predicated region
  $region14: #{lstm_keyword_spotter_forward.1} parent=0 // pred_check
    _
  $region15: #{lstm_keyword_spotter_forward.1} parent=0 // pred_check_branch
    %21 = sbr.rel (0) target = $region17
  $region16: #{lstm_keyword_spotter_forward.1} parent=0 // pred_region
    _
  $region17: #{lstm_keyword_spotter_forward.1} parent=0 // pred_fallthru
    _
  // Predicated region
  $region18: #{lstm_keyword_spotter_forward.1} parent=0 // pred_check
    _
  $region19: #{lstm_keyword_spotter_forward.1} parent=0 // pred_check_branch
    %23 = sbr.rel (0) target = $region21
  $region20: #{lstm_keyword_spotter_forward.1} parent=0 // pred_region
    _
  $region21: #{lstm_keyword_spotter_forward.1} parent=0 // pred_fallthru
    _
  // Predicated region
  $region22: #{lstm_keyword_spotter_forward.1} parent=0 // pred_check
    _
  $region23: #{lstm_keyword_spotter_forward.1} parent=0 // pred_check_branch
    %25 = sbr.rel (0) target = $region25
  $region24: #{lstm_keyword_spotter_forward.1} parent=0 // pred_region
    _
  $region25: #{lstm_keyword_spotter_forward.1} parent=0 // pred_fallthru
    _
  // Predicated region
  $region26: #{lstm_keyword_spotter_forward.1} parent=0 // pred_check
    _
  $region27: #{lstm_keyword_spotter_forward.1} parent=0 // pred_check_branch
    %27 = sbr.rel (0) target = $region29
  $region28: #{lstm_keyword_spotter_forward.1} parent=0 // pred_region
    _
  $region29: #{lstm_keyword_spotter_forward.1} parent=0 // pred_fallthru
    _
  // Predicated region
  $region30: #{lstm_keyword_spotter_forward.1} parent=0 // pred_check
    _
  $region31: #{lstm_keyword_spotter_forward.1} parent=0 // pred_check_branch
    %29 = sbr.rel (0) target = $region33
  $region32: #{lstm_keyword_spotter_forward.1} parent=0 // pred_region
    _
  $region33: #{lstm_keyword_spotter_forward.1} parent=0 // pred_fallthru
    _
  // Predicated region
  $region34: #{lstm_keyword_spotter_forward.1} parent=0 // pred_check
    _
  $region35: #{lstm_keyword_spotter_forward.1} parent=0 // pred_check_branch
    %31 = sbr.rel (0) target = $region37
  $region36: #{lstm_keyword_spotter_forward.1} parent=0 // pred_region
    _
  $region37: #{lstm_keyword_spotter_forward.1} parent=0 // pred_fallthru
    _
  %v32 = vld [vmem:[%s0] sm:$0xff]
  %v33 = vld [vmem:[%s0 + $0x8] sm:$0xff]
  %v34 = vld [vmem:[%s0 + $0x10] sm:$0xff]
  %v35 = vld [vmem:[%s0 + $0x18] sm:$0xff]
  %v36 = vld [vmem:[%s0 + $0x20] sm:$0xff]
  %v37 = vld [vmem:[%s0 + $0x28] sm:$0xff]
  %v38 = vld [vmem:[%s0 + $0x30] sm:$0xff]
  %v39 = vld [vmem:[%s0 + $0x38] sm:$0xff]
  %v40 = vld [vmem:[%s1] sm:$0xff]
  %v41 = vld [vmem:[%s1 + $0x8] sm:$0xff]
  %v42 = vld [vmem:[%s2] sm:$0xff]
  %v43 = vld [vmem:[%s2 + $0x8] sm:$0xff]
  %v44 = vld [vmem:[%s2 + $0x10] sm:$0xff]
  %v45 = vld [vmem:[%s2 + $0x18] sm:$0xff]
  %v46 = vld [vmem:[%s3] sm:$0x1]
  %v48 = vlaneseq
  %v49 = vshrl.u32 %v48, 7
  %v50 = vsub.s32 0, %v49
  %v51 = vrot.slane %v46, %v50
  %vm53 = vcmask 130048
  %v55 = vsel %vm53, %v32, 0
  %v58 = vsel %vm53, %v33, 0
  %v61 = vsel %vm53, %v34, 0
  %v64 = vsel %vm53, %v35, 0
  %v67 = vsel %vm53, %v36, 0
  %v70 = vsel %vm53, %v37, 0
  %v73 = vsel %vm53, %v38, 0
  %v76 = vsel %vm53, %v39, 0
  %78 = vmatprep.subr.mxu0 0.0
  %79 = vmatpush1.msra.mxu0 %v40
  %80 = vmatprep.subr.mxu0 0.0
  %81 = vmatpush1.msra.mxu0 %v41
  %82 = vmatprep.subr.mxu0 0.0
  %83 = vmatpush1.msra.mxu0 0.0
  %84 = vmatprep.subr.mxu0 0.0
  %85 = vmatpush1.msra.mxu0 0.0
  %86 = vmatprep.subr.mxu0 0.0
  %87 = vmatpush1.msra.mxu0 0.0
  %88 = vmatprep.subr.mxu0 0.0
  %89 = vmatpush1.msra.mxu0 0.0
  %90 = vmatprep.subr.mxu0 0.0
  %91 = vmatpush1.msra.mxu0 0.0
  %92 = vmatprep.subr.mxu0 0.0
  %93 = vmatpush1.msra.mxu0 0.0
  %94 = vmatprep.subr.mxu0 0.0
  %95 = vmatpush1.msra.mxu0 0.0
  %96 = vmatprep.subr.mxu0 0.0
  %97 = vmatpush1.msra.mxu0 0.0
  %98 = vmatprep.subr.mxu0 0.0
  %99 = vmatpush1.msra.mxu0 0.0
  %100 = vmatprep.subr.mxu0 0.0
  %101 = vmatpush1.msra.mxu0 0.0
  %102 = vmatprep.subr.mxu0 0.0
  %103 = vmatpush1.msra.mxu0 0.0
  %104 = vmatprep.subr.mxu0 0.0
  %105 = vmatpush1.msra.mxu0 0.0
  %106 = vmatprep.subr.mxu0 0.0
  %107 = vmatpush1.msra.mxu0 0.0
  %108 = vmatprep.subr.mxu0 0.0
  %109 = vmatpush1.msra.mxu0 0.0
  %110 = vmatprep.subr.mxu0 0.0
  %111 = vmatpush1.msra.mxu0 0.0
  %112 = vmatprep.subr.mxu0 0.0
  %113 = vmatpush1.msra.mxu0 0.0
  %114 = vmatprep.subr.mxu0 0.0
  %115 = vmatpush1.msra.mxu0 0.0
  %116 = vmatprep.subr.mxu0 0.0
  %117 = vmatpush1.msra.mxu0 0.0
  %118 = vmatprep.subr.mxu0 0.0
  %119 = vmatpush1.msra.mxu0 0.0
  %120 = vmatprep.subr.mxu0 0.0
  %121 = vmatpush1.msra.mxu0 0.0
  %122 = vmatprep.subr.mxu0 0.0
  %123 = vmatpush1.msra.mxu0 0.0
  %124 = vmatprep.subr.mxu0 0.0
  %125 = vmatpush1.msra.mxu0 0.0
  %126 = vmatprep.subr.mxu0 0.0
  %127 = vmatpush1.msra.mxu0 0.0
  %128 = vmatprep.subr.mxu0 0.0
  %129 = vmatpush1.msra.mxu0 0.0
  %130 = vmatprep.subr.mxu0 0.0
  %131 = vmatpush1.msra.mxu0 0.0
  %132 = vmatprep.subr.mxu0 0.0
  %133 = vmatpush1.msra.mxu0 0.0
  %134 = vmatprep.subr.mxu0 0.0
  %135 = vmatpush1.msra.mxu0 0.0
  %136 = vmatprep.subr.mxu0 0.0
  %137 = vmatpush1.msra.mxu0 0.0
  %138 = vmatprep.subr.mxu0 0.0
  %139 = vmatpush1.msra.mxu0 0.0
  %140 = vmatprep.subr.mxu0 0.0
  %141 = vmatpush1.msra.mxu0 0.0
  %142 = vmatprep.mubr.f32.mxu0 0.0
  %143 = vmatmul.mubr.f32.gmra.mrb[0].mxu0 %v55
  %v144 = vpop.f32.mrb[0].mxu0
  %v145 = vadd.f32 %v51, %v144
  %v146 = vpop.f32.mrb[0].mxu0
  %147 = vmatprep.mubr.f32.mxu0 0.0
  %148 = vmatmul.mubr.f32.gmra.mrb[0].mxu0 %v58
  %v149 = vpop.f32.mrb[0].mxu0
  %v150 = vadd.f32 %v51, %v149
  %v151 = vpop.f32.mrb[0].mxu0
  %152 = vmatprep.mubr.f32.mxu0 0.0
  %153 = vmatmul.mubr.f32.gmra.mrb[0].mxu0 %v61
  %v154 = vpop.f32.mrb[0].mxu0
  %v155 = vadd.f32 %v51, %v154
  %v156 = vpop.f32.mrb[0].mxu0
  %157 = vmatprep.mubr.f32.mxu0 0.0
  %158 = vmatmul.mubr.f32.gmra.mrb[0].mxu0 %v64
  %v159 = vpop.f32.mrb[0].mxu0
  %v160 = vadd.f32 %v51, %v159
  %v161 = vpop.f32.mrb[0].mxu0
  %162 = vmatprep.mubr.f32.mxu0 0.0
  %163 = vmatmul.mubr.f32.gmra.mrb[0].mxu0 %v67
  %v164 = vpop.f32.mrb[0].mxu0
  %v165 = vadd.f32 %v51, %v164
  %v166 = vpop.f32.mrb[0].mxu0
  %167 = vmatprep.mubr.f32.mxu0 0.0
  %168 = vmatmul.mubr.f32.gmra.mrb[0].mxu0 %v70
  %v169 = vpop.f32.mrb[0].mxu0
  %v170 = vadd.f32 %v51, %v169
  %v171 = vpop.f32.mrb[0].mxu0
  %172 = vmatprep.mubr.f32.mxu0 0.0
  %173 = vmatmul.mubr.f32.gmra.mrb[0].mxu0 %v73
  %v174 = vpop.f32.mrb[0].mxu0
  %v175 = vadd.f32 %v51, %v174
  %v176 = vpop.f32.mrb[0].mxu0
  %177 = vmatprep.mubr.f32.mxu0 0.0
  %178 = vmatmul.mubr.f32.gmra.mrb[0].mxu0 %v76
  %v179 = vpop.f32.mrb[0].mxu0
  %v180 = vadd.f32 %v51, %v179
  %v181 = vpop.f32.mrb[0].mxu0
  %182 = vdwg.mxu0
  %vm183 = vcmask 261120
  %v185 = vsel %vm183, 0.0, 0
  %187 = vmatprep.subr.mxu0 0.0
  %188 = vmatpush1.msra.mxu0 %v42
  %189 = vmatprep.subr.mxu0 0.0
  %190 = vmatpush1.msra.mxu0 %v43
  %191 = vmatprep.subr.mxu0 0.0
  %192 = vmatpush1.msra.mxu0 %v44
  %193 = vmatprep.subr.mxu0 0.0
  %194 = vmatpush1.msra.mxu0 %v45
  %195 = vmatprep.subr.mxu0 0.0
  %196 = vmatpush1.msra.mxu0 0.0
  %197 = vmatprep.subr.mxu0 0.0
  %198 = vmatpush1.msra.mxu0 0.0
  %199 = vmatprep.subr.mxu0 0.0
  %200 = vmatpush1.msra.mxu0 0.0
  %201 = vmatprep.subr.mxu0 0.0
  %202 = vmatpush1.msra.mxu0 0.0
  %203 = vmatprep.subr.mxu0 0.0
  %204 = vmatpush1.msra.mxu0 0.0
  %205 = vmatprep.subr.mxu0 0.0
  %206 = vmatpush1.msra.mxu0 0.0
  %207 = vmatprep.subr.mxu0 0.0
  %208 = vmatpush1.msra.mxu0 0.0
  %209 = vmatprep.subr.mxu0 0.0
  %210 = vmatpush1.msra.mxu0 0.0
  %211 = vmatprep.subr.mxu0 0.0
  %212 = vmatpush1.msra.mxu0 0.0
  %213 = vmatprep.subr.mxu0 0.0
  %214 = vmatpush1.msra.mxu0 0.0
  %215 = vmatprep.subr.mxu0 0.0
  %216 = vmatpush1.msra.mxu0 0.0
  %217 = vmatprep.subr.mxu0 0.0
  %218 = vmatpush1.msra.mxu0 0.0
  %219 = vmatprep.subr.mxu0 0.0
  %220 = vmatpush1.msra.mxu0 0.0
  %221 = vmatprep.subr.mxu0 0.0
  %222 = vmatpush1.msra.mxu0 0.0
  %223 = vmatprep.subr.mxu0 0.0
  %224 = vmatpush1.msra.mxu0 0.0
  %225 = vmatprep.subr.mxu0 0.0
  %226 = vmatpush1.msra.mxu0 0.0
  %227 = vmatprep.subr.mxu0 0.0
  %228 = vmatpush1.msra.mxu0 0.0
  %229 = vmatprep.subr.mxu0 0.0
  %230 = vmatpush1.msra.mxu0 0.0
  %231 = vmatprep.subr.mxu0 0.0
  %232 = vmatpush1.msra.mxu0 0.0
  %233 = vmatprep.subr.mxu0 0.0
  %234 = vmatpush1.msra.mxu0 0.0
  %235 = vmatprep.subr.mxu0 0.0
  %236 = vmatpush1.msra.mxu0 0.0
  %237 = vmatprep.subr.mxu0 0.0
  %238 = vmatpush1.msra.mxu0 0.0
  %239 = vmatprep.subr.mxu0 0.0
  %240 = vmatpush1.msra.mxu0 0.0
  %241 = vmatprep.subr.mxu0 0.0
  %242 = vmatpush1.msra.mxu0 0.0
  %243 = vmatprep.subr.mxu0 0.0
  %244 = vmatpush1.msra.mxu0 0.0
  %245 = vmatprep.subr.mxu0 0.0
  %246 = vmatpush1.msra.mxu0 0.0
  %247 = vmatprep.subr.mxu0 0.0
  %248 = vmatpush1.msra.mxu0 0.0
  %249 = vmatprep.subr.mxu0 0.0
  %250 = vmatpush1.msra.mxu0 0.0
  %251 = vmatprep.mubr.f32.mxu0 0.0
  %252 = vmatmul.mubr.f32.gmra.mrb[0].mxu0 %v185
  %v253 = vpop.f32.mrb[0].mxu0
  %v254 = vadd.f32 0.0, %v253
  %v255 = vpop.f32.mrb[0].mxu0
  %256 = vdwg.mxu0
  %v257 = vadd.f32 %v145, %v254
  %v258 = vtanh.pop %v257
  %v259 = vmul.f32 %v258, 0.5
  %v260 = vadd.f32 %v259, 0.5
  %v261 = vmul.f32 %v260, 0.0
  %263 = vrot.lane.b32.xlu0 %v258, 64
  %v264 = vpop.permute.xlu0 %263
  %v266 = vmul.f32 %v260, %v264
  %268 = vrot.lane.b32.xlu0 %v266, 32
  %v269 = vpop.permute.xlu0 %268
  %v271 = vadd.f32 %v261, %v269
  %v272 = vtanh.pop %v271
  %274 = vrot.lane.b32.xlu0 %v272, 64
  %v275 = vpop.permute.xlu0 %274
  %v277 = vmul.f32 %v260, %v275
  %279 = vrot.lane.b32.xlu0 %v277, 32
  %v280 = vpop.permute.xlu0 %279
  %v281 = vsel %vm183, %v280, 0
  %283 = vmatprep.subr.mxu0 0.0
  %284 = vmatpush1.msra.mxu0 %v42
  %285 = vmatprep.subr.mxu0 0.0
  %286 = vmatpush1.msra.mxu0 %v43
  %287 = vmatprep.subr.mxu0 0.0
  %288 = vmatpush1.msra.mxu0 %v44
  %289 = vmatprep.subr.mxu0 0.0
  %290 = vmatpush1.msra.mxu0 %v45
  %291 = vmatprep.subr.mxu0 0.0
  %292 = vmatpush1.msra.mxu0 0.0
  %293 = vmatprep.subr.mxu0 0.0
  %294 = vmatpush1.msra.mxu0 0.0
  %295 = vmatprep.subr.mxu0 0.0
  %296 = vmatpush1.msra.mxu0 0.0
  %297 = vmatprep.subr.mxu0 0.0
  %298 = vmatpush1.msra.mxu0 0.0
  %299 = vmatprep.subr.mxu0 0.0
  %300 = vmatpush1.msra.mxu0 0.0
  %301 = vmatprep.subr.mxu0 0.0
  %302 = vmatpush1.msra.mxu0 0.0
  %303 = vmatprep.subr.mxu0 0.0
  %304 = vmatpush1.msra.mxu0 0.0
  %305 = vmatprep.subr.mxu0 0.0
  %306 = vmatpush1.msra.mxu0 0.0
  %307 = vmatprep.subr.mxu0 0.0
  %308 = vmatpush1.msra.mxu0 0.0
  %309 = vmatprep.subr.mxu0 0.0
  %310 = vmatpush1.msra.mxu0 0.0
  %311 = vmatprep.subr.mxu0 0.0
  %312 = vmatpush1.msra.mxu0 0.0
  %313 = vmatprep.subr.mxu0 0.0
  %314 = vmatpush1.msra.mxu0 0.0
  %315 = vmatprep.subr.mxu0 0.0
  %316 = vmatpush1.msra.mxu0 0.0
  %317 = vmatprep.subr.mxu0 0.0
  %318 = vmatpush1.msra.mxu0 0.0
  %319 = vmatprep.subr.mxu0 0.0
  %320 = vmatpush1.msra.mxu0 0.0
  %321 = vmatprep.subr.mxu0 0.0
  %322 = vmatpush1.msra.mxu0 0.0
  %323 = vmatprep.subr.mxu0 0.0
  %324 = vmatpush1.msra.mxu0 0.0
  %325 = vmatprep.subr.mxu0 0.0
  %326 = vmatpush1.msra.mxu0 0.0
  %327 = vmatprep.subr.mxu0 0.0
  %328 = vmatpush1.msra.mxu0 0.0
  %329 = vmatprep.subr.mxu0 0.0
  %330 = vmatpush1.msra.mxu0 0.0
  %331 = vmatprep.subr.mxu0 0.0
  %332 = vmatpush1.msra.mxu0 0.0
  %333 = vmatprep.subr.mxu0 0.0
  %334 = vmatpush1.msra.mxu0 0.0
  %335 = vmatprep.subr.mxu0 0.0
  %336 = vmatpush1.msra.mxu0 0.0
  %337 = vmatprep.subr.mxu0 0.0
  %338 = vmatpush1.msra.mxu0 0.0
  %339 = vmatprep.subr.mxu0 0.0
  %340 = vmatpush1.msra.mxu0 0.0
  %341 = vmatprep.subr.mxu0 0.0
  %342 = vmatpush1.msra.mxu0 0.0
  %343 = vmatprep.subr.mxu0 0.0
  %344 = vmatpush1.msra.mxu0 0.0
  %345 = vmatprep.subr.mxu0 0.0
  %346 = vmatpush1.msra.mxu0 0.0
  %347 = vmatprep.mubr.f32.mxu0 0.0
  %348 = vmatmul.mubr.f32.gmra.mrb[0].mxu0 %v281
  %v349 = vpop.f32.mrb[0].mxu0
  %v350 = vadd.f32 0.0, %v349
  %v351 = vpop.f32.mrb[0].mxu0
  %352 = vdwg.mxu0
  %v353 = vadd.f32 %v150, %v350
  %v354 = vtanh.pop %v353
  %v355 = vmul.f32 %v354, 0.5
  %v356 = vadd.f32 %v355, 0.5
  %v357 = vmul.f32 %v356, %v271
  %359 = vrot.lane.b32.xlu0 %v354, 64
  %v360 = vpop.permute.xlu0 %359
  %v362 = vmul.f32 %v356, %v360
  %364 = vrot.lane.b32.xlu0 %v362, 32
  %v365 = vpop.permute.xlu0 %364
  %v367 = vadd.f32 %v357, %v365
  %v368 = vtanh.pop %v367
  %370 = vrot.lane.b32.xlu0 %v368, 64
  %v371 = vpop.permute.xlu0 %370
  %v373 = vmul.f32 %v356, %v371
  %375 = vrot.lane.b32.xlu0 %v373, 32
  %v376 = vpop.permute.xlu0 %375
  %v377 = vsel %vm183, %v376, 0
  %379 = vmatprep.subr.mxu0 0.0
  %380 = vmatpush1.msra.mxu0 %v42
  %381 = vmatprep.subr.mxu0 0.0
  %382 = vmatpush1.msra.mxu0 %v43
  %383 = vmatprep.subr.mxu0 0.0
  %384 = vmatpush1.msra.mxu0 %v44
  %385 = vmatprep.subr.mxu0 0.0
  %386 = vmatpush1.msra.mxu0 %v45
  %387 = vmatprep.subr.mxu0 0.0
  %388 = vmatpush1.msra.mxu0 0.0
  %389 = vmatprep.subr.mxu0 0.0
  %390 = vmatpush1.msra.mxu0 0.0
  %391 = vmatprep.subr.mxu0 0.0
  %392 = vmatpush1.msra.mxu0 0.0
  %393 = vmatprep.subr.mxu0 0.0
  %394 = vmatpush1.msra.mxu0 0.0
  %395 = vmatprep.subr.mxu0 0.0
  %396 = vmatpush1.msra.mxu0 0.0
  %397 = vmatprep.subr.mxu0 0.0
  %398 = vmatpush1.msra.mxu0 0.0
  %399 = vmatprep.subr.mxu0 0.0
  %400 = vmatpush1.msra.mxu0 0.0
  %401 = vmatprep.subr.mxu0 0.0
  %402 = vmatpush1.msra.mxu0 0.0
  %403 = vmatprep.subr.mxu0 0.0
  %404 = vmatpush1.msra.mxu0 0.0
  %405 = vmatprep.subr.mxu0 0.0
  %406 = vmatpush1.msra.mxu0 0.0
  %407 = vmatprep.subr.mxu0 0.0
  %408 = vmatpush1.msra.mxu0 0.0
  %409 = vmatprep.subr.mxu0 0.0
  %410 = vmatpush1.msra.mxu0 0.0
  %411 = vmatprep.subr.mxu0 0.0
  %412 = vmatpush1.msra.mxu0 0.0
  %413 = vmatprep.subr.mxu0 0.0
  %414 = vmatpush1.msra.mxu0 0.0
  %415 = vmatprep.subr.mxu0 0.0
  %416 = vmatpush1.msra.mxu0 0.0
  %417 = vmatprep.subr.mxu0 0.0
  %418 = vmatpush1.msra.mxu0 0.0
  %419 = vmatprep.subr.mxu0 0.0
  %420 = vmatpush1.msra.mxu0 0.0
  %421 = vmatprep.subr.mxu0 0.0
  %422 = vmatpush1.msra.mxu0 0.0
  %423 = vmatprep.subr.mxu0 0.0
  %424 = vmatpush1.msra.mxu0 0.0
  %425 = vmatprep.subr.mxu0 0.0
  %426 = vmatpush1.msra.mxu0 0.0
  %427 = vmatprep.subr.mxu0 0.0
  %428 = vmatpush1.msra.mxu0 0.0
  %429 = vmatprep.subr.mxu0 0.0
  %430 = vmatpush1.msra.mxu0 0.0
  %431 = vmatprep.subr.mxu0 0.0
  %432 = vmatpush1.msra.mxu0 0.0
  %433 = vmatprep.subr.mxu0 0.0
  %434 = vmatpush1.msra.mxu0 0.0
  %435 = vmatprep.subr.mxu0 0.0
  %436 = vmatpush1.msra.mxu0 0.0
  %437 = vmatprep.subr.mxu0 0.0
  %438 = vmatpush1.msra.mxu0 0.0
  %439 = vmatprep.subr.mxu0 0.0
  %440 = vmatpush1.msra.mxu0 0.0
  %441 = vmatprep.subr.mxu0 0.0
  %442 = vmatpush1.msra.mxu0 0.0
  %443 = vmatprep.mubr.f32.mxu0 0.0
  %444 = vmatmul.mubr.f32.gmra.mrb[0].mxu0 %v377
  %v445 = vpop.f32.mrb[0].mxu0
  %v446 = vadd.f32 0.0, %v445
  %v447 = vpop.f32.mrb[0].mxu0
  %448 = vdwg.mxu0
  %v449 = vadd.f32 %v155, %v446
  %v450 = vtanh.pop %v449
  %v451 = vmul.f32 %v450, 0.5
  %v452 = vadd.f32 %v451, 0.5
  %v453 = vmul.f32 %v452, %v367
  %455 = vrot.lane.b32.xlu0 %v450, 64
  %v456 = vpop.permute.xlu0 %455
  %v458 = vmul.f32 %v452, %v456
  %460 = vrot.lane.b32.xlu0 %v458, 32
  %v461 = vpop.permute.xlu0 %460
  %v463 = vadd.f32 %v453, %v461
  %v464 = vtanh.pop %v463
  %466 = vrot.lane.b32.xlu0 %v464, 64
  %v467 = vpop.permute.xlu0 %466
  %v469 = vmul.f32 %v452, %v467
  %471 = vrot.lane.b32.xlu0 %v469, 32
  %v472 = vpop.permute.xlu0 %471
  %v473 = vsel %vm183, %v472, 0
  %475 = vmatprep.subr.mxu0 0.0
  %476 = vmatpush1.msra.mxu0 %v42
  %477 = vmatprep.subr.mxu0 0.0
  %478 = vmatpush1.msra.mxu0 %v43
  %479 = vmatprep.subr.mxu0 0.0
  %480 = vmatpush1.msra.mxu0 %v44
  %481 = vmatprep.subr.mxu0 0.0
  %482 = vmatpush1.msra.mxu0 %v45
  %483 = vmatprep.subr.mxu0 0.0
  %484 = vmatpush1.msra.mxu0 0.0
  %485 = vmatprep.subr.mxu0 0.0
  %486 = vmatpush1.msra.mxu0 0.0
  %487 = vmatprep.subr.mxu0 0.0
  %488 = vmatpush1.msra.mxu0 0.0
  %489 = vmatprep.subr.mxu0 0.0
  %490 = vmatpush1.msra.mxu0 0.0
  %491 = vmatprep.subr.mxu0 0.0
  %492 = vmatpush1.msra.mxu0 0.0
  %493 = vmatprep.subr.mxu0 0.0
  %494 = vmatpush1.msra.mxu0 0.0
  %495 = vmatprep.subr.mxu0 0.0
  %496 = vmatpush1.msra.mxu0 0.0
  %497 = vmatprep.subr.mxu0 0.0
  %498 = vmatpush1.msra.mxu0 0.0
  %499 = vmatprep.subr.mxu0 0.0
  %500 = vmatpush1.msra.mxu0 0.0
  %501 = vmatprep.subr.mxu0 0.0
  %502 = vmatpush1.msra.mxu0 0.0
  %503 = vmatprep.subr.mxu0 0.0
  %504 = vmatpush1.msra.mxu0 0.0
  %505 = vmatprep.subr.mxu0 0.0
  %506 = vmatpush1.msra.mxu0 0.0
  %507 = vmatprep.subr.mxu0 0.0
  %508 = vmatpush1.msra.mxu0 0.0
  %509 = vmatprep.subr.mxu0 0.0
  %510 = vmatpush1.msra.mxu0 0.0
  %511 = vmatprep.subr.mxu0 0.0
  %512 = vmatpush1.msra.mxu0 0.0
  %513 = vmatprep.subr.mxu0 0.0
  %514 = vmatpush1.msra.mxu0 0.0
  %515 = vmatprep.subr.mxu0 0.0
  %516 = vmatpush1.msra.mxu0 0.0
  %517 = vmatprep.subr.mxu0 0.0
  %518 = vmatpush1.msra.mxu0 0.0
  %519 = vmatprep.subr.mxu0 0.0
  %520 = vmatpush1.msra.mxu0 0.0
  %521 = vmatprep.subr.mxu0 0.0
  %522 = vmatpush1.msra.mxu0 0.0
  %523 = vmatprep.subr.mxu0 0.0
  %524 = vmatpush1.msra.mxu0 0.0
  %525 = vmatprep.subr.mxu0 0.0
  %526 = vmatpush1.msra.mxu0 0.0
  %527 = vmatprep.subr.mxu0 0.0
  %528 = vmatpush1.msra.mxu0 0.0
  %529 = vmatprep.subr.mxu0 0.0
  %530 = vmatpush1.msra.mxu0 0.0
  %531 = vmatprep.subr.mxu0 0.0
  %532 = vmatpush1.msra.mxu0 0.0
  %533 = vmatprep.subr.mxu0 0.0
  %534 = vmatpush1.msra.mxu0 0.0
  %535 = vmatprep.subr.mxu0 0.0
  %536 = vmatpush1.msra.mxu0 0.0
  %537 = vmatprep.subr.mxu0 0.0
  %538 = vmatpush1.msra.mxu0 0.0
  %539 = vmatprep.mubr.f32.mxu0 0.0
  %540 = vmatmul.mubr.f32.gmra.mrb[0].mxu0 %v473
  %v541 = vpop.f32.mrb[0].mxu0
  %v542 = vadd.f32 0.0, %v541
  %v543 = vpop.f32.mrb[0].mxu0
  %544 = vdwg.mxu0
  %v545 = vadd.f32 %v160, %v542
  %v546 = vtanh.pop %v545
  %v547 = vmul.f32 %v546, 0.5
  %v548 = vadd.f32 %v547, 0.5
  %v549 = vmul.f32 %v548, %v463
  %551 = vrot.lane.b32.xlu0 %v546, 64
  %v552 = vpop.permute.xlu0 %551
  %v554 = vmul.f32 %v548, %v552
  %556 = vrot.lane.b32.xlu0 %v554, 32
  %v557 = vpop.permute.xlu0 %556
  %v559 = vadd.f32 %v549, %v557
  %v560 = vtanh.pop %v559
  %562 = vrot.lane.b32.xlu0 %v560, 64
  %v563 = vpop.permute.xlu0 %562
  %v565 = vmul.f32 %v548, %v563
  %567 = vrot.lane.b32.xlu0 %v565, 32
  %v568 = vpop.permute.xlu0 %567
  %v569 = vsel %vm183, %v568, 0
  %571 = vmatprep.subr.mxu0 0.0
  %572 = vmatpush1.msra.mxu0 %v42
  %573 = vmatprep.subr.mxu0 0.0
  %574 = vmatpush1.msra.mxu0 %v43
  %575 = vmatprep.subr.mxu0 0.0
  %576 = vmatpush1.msra.mxu0 %v44
  %577 = vmatprep.subr.mxu0 0.0
  %578 = vmatpush1.msra.mxu0 %v45
  %579 = vmatprep.subr.mxu0 0.0
  %580 = vmatpush1.msra.mxu0 0.0
  %581 = vmatprep.subr.mxu0 0.0
  %582 = vmatpush1.msra.mxu0 0.0
  %583 = vmatprep.subr.mxu0 0.0
  %584 = vmatpush1.msra.mxu0 0.0
  %585 = vmatprep.subr.mxu0 0.0
  %586 = vmatpush1.msra.mxu0 0.0
  %587 = vmatprep.subr.mxu0 0.0
  %588 = vmatpush1.msra.mxu0 0.0
  %589 = vmatprep.subr.mxu0 0.0
  %590 = vmatpush1.msra.mxu0 0.0
  %591 = vmatprep.subr.mxu0 0.0
  %592 = vmatpush1.msra.mxu0 0.0
  %593 = vmatprep.subr.mxu0 0.0
  %594 = vmatpush1.msra.mxu0 0.0
  %595 = vmatprep.subr.mxu0 0.0
  %596 = vmatpush1.msra.mxu0 0.0
  %597 = vmatprep.subr.mxu0 0.0
  %598 = vmatpush1.msra.mxu0 0.0
  %599 = vmatprep.subr.mxu0 0.0
  %600 = vmatpush1.msra.mxu0 0.0
  %601 = vmatprep.subr.mxu0 0.0
  %602 = vmatpush1.msra.mxu0 0.0
  %603 = vmatprep.subr.mxu0 0.0
  %604 = vmatpush1.msra.mxu0 0.0
  %605 = vmatprep.subr.mxu0 0.0
  %606 = vmatpush1.msra.mxu0 0.0
  %607 = vmatprep.subr.mxu0 0.0
  %608 = vmatpush1.msra.mxu0 0.0
  %609 = vmatprep.subr.mxu0 0.0
  %610 = vmatpush1.msra.mxu0 0.0
  %611 = vmatprep.subr.mxu0 0.0
  %612 = vmatpush1.msra.mxu0 0.0
  %613 = vmatprep.subr.mxu0 0.0
  %614 = vmatpush1.msra.mxu0 0.0
  %615 = vmatprep.subr.mxu0 0.0
  %616 = vmatpush1.msra.mxu0 0.0
  %617 = vmatprep.subr.mxu0 0.0
  %618 = vmatpush1.msra.mxu0 0.0
  %619 = vmatprep.subr.mxu0 0.0
  %620 = vmatpush1.msra.mxu0 0.0
  %621 = vmatprep.subr.mxu0 0.0
  %622 = vmatpush1.msra.mxu0 0.0
  %623 = vmatprep.subr.mxu0 0.0
  %624 = vmatpush1.msra.mxu0 0.0
  %625 = vmatprep.subr.mxu0 0.0
  %626 = vmatpush1.msra.mxu0 0.0
  %627 = vmatprep.subr.mxu0 0.0
  %628 = vmatpush1.msra.mxu0 0.0
  %629 = vmatprep.subr.mxu0 0.0
  %630 = vmatpush1.msra.mxu0 0.0
  %631 = vmatprep.subr.mxu0 0.0
  %632 = vmatpush1.msra.mxu0 0.0
  %633 = vmatprep.subr.mxu0 0.0
  %634 = vmatpush1.msra.mxu0 0.0
  %635 = vmatprep.mubr.f32.mxu0 0.0
  %636 = vmatmul.mubr.f32.gmra.mrb[0].mxu0 %v569
  %v637 = vpop.f32.mrb[0].mxu0
  %v638 = vadd.f32 0.0, %v637
  %v639 = vpop.f32.mrb[0].mxu0
  %640 = vdwg.mxu0
  %v641 = vadd.f32 %v165, %v638
  %v642 = vtanh.pop %v641
  %v643 = vmul.f32 %v642, 0.5
  %v644 = vadd.f32 %v643, 0.5
  %v645 = vmul.f32 %v644, %v559
  %647 = vrot.lane.b32.xlu0 %v642, 64
  %v648 = vpop.permute.xlu0 %647
  %v650 = vmul.f32 %v644, %v648
  %652 = vrot.lane.b32.xlu0 %v650, 32
  %v653 = vpop.permute.xlu0 %652
  %v655 = vadd.f32 %v645, %v653
  %v656 = vtanh.pop %v655
  %658 = vrot.lane.b32.xlu0 %v656, 64
  %v659 = vpop.permute.xlu0 %658
  %v661 = vmul.f32 %v644, %v659
  %663 = vrot.lane.b32.xlu0 %v661, 32
  %v664 = vpop.permute.xlu0 %663
  %v665 = vsel %vm183, %v664, 0
  %667 = vmatprep.subr.mxu0 0.0
  %668 = vmatpush1.msra.mxu0 %v42
  %669 = vmatprep.subr.mxu0 0.0
  %670 = vmatpush1.msra.mxu0 %v43
  %671 = vmatprep.subr.mxu0 0.0
  %672 = vmatpush1.msra.mxu0 %v44
  %673 = vmatprep.subr.mxu0 0.0
  %674 = vmatpush1.msra.mxu0 %v45
  %675 = vmatprep.subr.mxu0 0.0
  %676 = vmatpush1.msra.mxu0 0.0
  %677 = vmatprep.subr.mxu0 0.0
  %678 = vmatpush1.msra.mxu0 0.0
  %679 = vmatprep.subr.mxu0 0.0
  %680 = vmatpush1.msra.mxu0 0.0
  %681 = vmatprep.subr.mxu0 0.0
  %682 = vmatpush1.msra.mxu0 0.0
  %683 = vmatprep.subr.mxu0 0.0
  %684 = vmatpush1.msra.mxu0 0.0
  %685 = vmatprep.subr.mxu0 0.0
  %686 = vmatpush1.msra.mxu0 0.0
  %687 = vmatprep.subr.mxu0 0.0
  %688 = vmatpush1.msra.mxu0 0.0
  %689 = vmatprep.subr.mxu0 0.0
  %690 = vmatpush1.msra.mxu0 0.0
  %691 = vmatprep.subr.mxu0 0.0
  %692 = vmatpush1.msra.mxu0 0.0
  %693 = vmatprep.subr.mxu0 0.0
  %694 = vmatpush1.msra.mxu0 0.0
  %695 = vmatprep.subr.mxu0 0.0
  %696 = vmatpush1.msra.mxu0 0.0
  %697 = vmatprep.subr.mxu0 0.0
  %698 = vmatpush1.msra.mxu0 0.0
  %699 = vmatprep.subr.mxu0 0.0
  %700 = vmatpush1.msra.mxu0 0.0
  %701 = vmatprep.subr.mxu0 0.0
  %702 = vmatpush1.msra.mxu0 0.0
  %703 = vmatprep.subr.mxu0 0.0
  %704 = vmatpush1.msra.mxu0 0.0
  %705 = vmatprep.subr.mxu0 0.0
  %706 = vmatpush1.msra.mxu0 0.0
  %707 = vmatprep.subr.mxu0 0.0
  %708 = vmatpush1.msra.mxu0 0.0
  %709 = vmatprep.subr.mxu0 0.0
  %710 = vmatpush1.msra.mxu0 0.0
  %711 = vmatprep.subr.mxu0 0.0
  %712 = vmatpush1.msra.mxu0 0.0
  %713 = vmatprep.subr.mxu0 0.0
  %714 = vmatpush1.msra.mxu0 0.0
  %715 = vmatprep.subr.mxu0 0.0
  %716 = vmatpush1.msra.mxu0 0.0
  %717 = vmatprep.subr.mxu0 0.0
  %718 = vmatpush1.msra.mxu0 0.0
  %719 = vmatprep.subr.mxu0 0.0
  %720 = vmatpush1.msra.mxu0 0.0
  %721 = vmatprep.subr.mxu0 0.0
  %722 = vmatpush1.msra.mxu0 0.0
  %723 = vmatprep.subr.mxu0 0.0
  %724 = vmatpush1.msra.mxu0 0.0
  %725 = vmatprep.subr.mxu0 0.0
  %726 = vmatpush1.msra.mxu0 0.0
  %727 = vmatprep.subr.mxu0 0.0
  %728 = vmatpush1.msra.mxu0 0.0
  %729 = vmatprep.subr.mxu0 0.0
  %730 = vmatpush1.msra.mxu0 0.0
  %731 = vmatprep.mubr.f32.mxu0 0.0
  %732 = vmatmul.mubr.f32.gmra.mrb[0].mxu0 %v665
  %v733 = vpop.f32.mrb[0].mxu0
  %v734 = vadd.f32 0.0, %v733
  %v735 = vpop.f32.mrb[0].mxu0
  %736 = vdwg.mxu0
  %v737 = vadd.f32 %v170, %v734
  %v738 = vtanh.pop %v737
  %v739 = vmul.f32 %v738, 0.5
  %v740 = vadd.f32 %v739, 0.5
  %v741 = vmul.f32 %v740, %v655
  %743 = vrot.lane.b32.xlu0 %v738, 64
  %v744 = vpop.permute.xlu0 %743
  %v746 = vmul.f32 %v740, %v744
  %748 = vrot.lane.b32.xlu0 %v746, 32
  %v749 = vpop.permute.xlu0 %748
  %v751 = vadd.f32 %v741, %v749
  %v752 = vtanh.pop %v751
  %754 = vrot.lane.b32.xlu0 %v752, 64
  %v755 = vpop.permute.xlu0 %754
  %v757 = vmul.f32 %v740, %v755
  %759 = vrot.lane.b32.xlu0 %v757, 32
  %v760 = vpop.permute.xlu0 %759
  %v761 = vsel %vm183, %v760, 0
  %763 = vmatprep.subr.mxu0 0.0
  %764 = vmatpush1.msra.mxu0 %v42
  %765 = vmatprep.subr.mxu0 0.0
  %766 = vmatpush1.msra.mxu0 %v43
  %767 = vmatprep.subr.mxu0 0.0
  %768 = vmatpush1.msra.mxu0 %v44
  %769 = vmatprep.subr.mxu0 0.0
  %770 = vmatpush1.msra.mxu0 %v45
  %771 = vmatprep.subr.mxu0 0.0
  %772 = vmatpush1.msra.mxu0 0.0
  %773 = vmatprep.subr.mxu0 0.0
  %774 = vmatpush1.msra.mxu0 0.0
  %775 = vmatprep.subr.mxu0 0.0
  %776 = vmatpush1.msra.mxu0 0.0
  %777 = vmatprep.subr.mxu0 0.0
  %778 = vmatpush1.msra.mxu0 0.0
  %779 = vmatprep.subr.mxu0 0.0
  %780 = vmatpush1.msra.mxu0 0.0
  %781 = vmatprep.subr.mxu0 0.0
  %782 = vmatpush1.msra.mxu0 0.0
  %783 = vmatprep.subr.mxu0 0.0
  %784 = vmatpush1.msra.mxu0 0.0
  %785 = vmatprep.subr.mxu0 0.0
  %786 = vmatpush1.msra.mxu0 0.0
  %787 = vmatprep.subr.mxu0 0.0
  %788 = vmatpush1.msra.mxu0 0.0
  %789 = vmatprep.subr.mxu0 0.0
  %790 = vmatpush1.msra.mxu0 0.0
  %791 = vmatprep.subr.mxu0 0.0
  %792 = vmatpush1.msra.mxu0 0.0
  %793 = vmatprep.subr.mxu0 0.0
  %794 = vmatpush1.msra.mxu0 0.0
  %795 = vmatprep.subr.mxu0 0.0
  %796 = vmatpush1.msra.mxu0 0.0
  %797 = vmatprep.subr.mxu0 0.0
  %798 = vmatpush1.msra.mxu0 0.0
  %799 = vmatprep.subr.mxu0 0.0
  %800 = vmatpush1.msra.mxu0 0.0
  %801 = vmatprep.subr.mxu0 0.0
  %802 = vmatpush1.msra.mxu0 0.0
  %803 = vmatprep.subr.mxu0 0.0
  %804 = vmatpush1.msra.mxu0 0.0
  %805 = vmatprep.subr.mxu0 0.0
  %806 = vmatpush1.msra.mxu0 0.0
  %807 = vmatprep.subr.mxu0 0.0
  %808 = vmatpush1.msra.mxu0 0.0
  %809 = vmatprep.subr.mxu0 0.0
  %810 = vmatpush1.msra.mxu0 0.0
  %811 = vmatprep.subr.mxu0 0.0
  %812 = vmatpush1.msra.mxu0 0.0
  %813 = vmatprep.subr.mxu0 0.0
  %814 = vmatpush1.msra.mxu0 0.0
  %815 = vmatprep.subr.mxu0 0.0
  %816 = vmatpush1.msra.mxu0 0.0
  %817 = vmatprep.subr.mxu0 0.0
  %818 = vmatpush1.msra.mxu0 0.0
  %819 = vmatprep.subr.mxu0 0.0
  %820 = vmatpush1.msra.mxu0 0.0
  %821 = vmatprep.subr.mxu0 0.0
  %822 = vmatpush1.msra.mxu0 0.0
  %823 = vmatprep.subr.mxu0 0.0
  %824 = vmatpush1.msra.mxu0 0.0
  %825 = vmatprep.subr.mxu0 0.0
  %826 = vmatpush1.msra.mxu0 0.0
  %827 = vmatprep.mubr.f32.mxu0 0.0
  %828 = vmatmul.mubr.f32.gmra.mrb[0].mxu0 %v761
  %v829 = vpop.f32.mrb[0].mxu0
  %v830 = vadd.f32 0.0, %v829
  %v831 = vpop.f32.mrb[0].mxu0
  %832 = vdwg.mxu0
  %v833 = vadd.f32 %v175, %v830
  %v834 = vtanh.pop %v833
  %v835 = vmul.f32 %v834, 0.5
  %v836 = vadd.f32 %v835, 0.5
  %v837 = vmul.f32 %v836, %v751
  %839 = vrot.lane.b32.xlu0 %v834, 64
  %v840 = vpop.permute.xlu0 %839
  %v842 = vmul.f32 %v836, %v840
  %844 = vrot.lane.b32.xlu0 %v842, 32
  %v845 = vpop.permute.xlu0 %844
  %v847 = vadd.f32 %v837, %v845
  %v848 = vtanh.pop %v847
  %850 = vrot.lane.b32.xlu0 %v848, 64
  %v851 = vpop.permute.xlu0 %850
  %v853 = vmul.f32 %v836, %v851
  %855 = vrot.lane.b32.xlu0 %v853, 32
  %v856 = vpop.permute.xlu0 %855
  %v857 = vsel %vm183, %v856, 0
  %859 = vmatprep.subr.mxu0 0.0
  %860 = vmatpush1.msra.mxu0 %v42
  %861 = vmatprep.subr.mxu0 0.0
  %862 = vmatpush1.msra.mxu0 %v43
  %863 = vmatprep.subr.mxu0 0.0
  %864 = vmatpush1.msra.mxu0 %v44
  %865 = vmatprep.subr.mxu0 0.0
  %866 = vmatpush1.msra.mxu0 %v45
  %867 = vmatprep.subr.mxu0 0.0
  %868 = vmatpush1.msra.mxu0 0.0
  %869 = vmatprep.subr.mxu0 0.0
  %870 = vmatpush1.msra.mxu0 0.0
  %871 = vmatprep.subr.mxu0 0.0
  %872 = vmatpush1.msra.mxu0 0.0
  %873 = vmatprep.subr.mxu0 0.0
  %874 = vmatpush1.msra.mxu0 0.0
  %875 = vmatprep.subr.mxu0 0.0
  %876 = vmatpush1.msra.mxu0 0.0
  %877 = vmatprep.subr.mxu0 0.0
  %878 = vmatpush1.msra.mxu0 0.0
  %879 = vmatprep.subr.mxu0 0.0
  %880 = vmatpush1.msra.mxu0 0.0
  %881 = vmatprep.subr.mxu0 0.0
  %882 = vmatpush1.msra.mxu0 0.0
  %883 = vmatprep.subr.mxu0 0.0
  %884 = vmatpush1.msra.mxu0 0.0
  %885 = vmatprep.subr.mxu0 0.0
  %886 = vmatpush1.msra.mxu0 0.0
  %887 = vmatprep.subr.mxu0 0.0
  %888 = vmatpush1.msra.mxu0 0.0
  %889 = vmatprep.subr.mxu0 0.0
  %890 = vmatpush1.msra.mxu0 0.0
  %891 = vmatprep.subr.mxu0 0.0
  %892 = vmatpush1.msra.mxu0 0.0
  %893 = vmatprep.subr.mxu0 0.0
  %894 = vmatpush1.msra.mxu0 0.0
  %895 = vmatprep.subr.mxu0 0.0
  %896 = vmatpush1.msra.mxu0 0.0
  %897 = vmatprep.subr.mxu0 0.0
  %898 = vmatpush1.msra.mxu0 0.0
  %899 = vmatprep.subr.mxu0 0.0
  %900 = vmatpush1.msra.mxu0 0.0
  %901 = vmatprep.subr.mxu0 0.0
  %902 = vmatpush1.msra.mxu0 0.0
  %903 = vmatprep.subr.mxu0 0.0
  %904 = vmatpush1.msra.mxu0 0.0
  %905 = vmatprep.subr.mxu0 0.0
  %906 = vmatpush1.msra.mxu0 0.0
  %907 = vmatprep.subr.mxu0 0.0
  %908 = vmatpush1.msra.mxu0 0.0
  %909 = vmatprep.subr.mxu0 0.0
  %910 = vmatpush1.msra.mxu0 0.0
  %911 = vmatprep.subr.mxu0 0.0
  %912 = vmatpush1.msra.mxu0 0.0
  %913 = vmatprep.subr.mxu0 0.0
  %914 = vmatpush1.msra.mxu0 0.0
  %915 = vmatprep.subr.mxu0 0.0
  %916 = vmatpush1.msra.mxu0 0.0
  %917 = vmatprep.subr.mxu0 0.0
  %918 = vmatpush1.msra.mxu0 0.0
  %919 = vmatprep.subr.mxu0 0.0
  %920 = vmatpush1.msra.mxu0 0.0
  %921 = vmatprep.subr.mxu0 0.0
  %922 = vmatpush1.msra.mxu0 0.0
  %923 = vmatprep.mubr.f32.mxu0 0.0
  %924 = vmatmul.mubr.f32.gmra.mrb[0].mxu0 %v857
  %v925 = vpop.f32.mrb[0].mxu0
  %v926 = vadd.f32 0.0, %v925
  %v927 = vpop.f32.mrb[0].mxu0
  %928 = vdwg.mxu0
  %v929 = vadd.f32 %v180, %v926
  %v930 = vtanh.pop %v929
  %v931 = vmul.f32 %v930, 0.5
  %v932 = vadd.f32 %v931, 0.5
  %v933 = vmul.f32 %v932, %v847
  %935 = vrot.lane.b32.xlu0 %v930, 64
  %v936 = vpop.permute.xlu0 %935
  %v938 = vmul.f32 %v932, %v936
  %940 = vrot.lane.b32.xlu0 %v938, 32
  %v941 = vpop.permute.xlu0 %940
  %v943 = vadd.f32 %v933, %v941
  %v944 = vtanh.pop %v943
  %946 = vrot.lane.b32.xlu0 %v944, 64
  %v947 = vpop.permute.xlu0 %946
  %v949 = vmul.f32 %v932, %v947
  %v950 = vld [vmem:[%s4] sm:$0xff]
  %v951 = vld [vmem:[%s4 + $0x8] sm:$0xff]
  %v952 = vld [vmem:[%s4 + $0x10] sm:$0xff]
  %v953 = vld [vmem:[%s4 + $0x18] sm:$0xff]
  %v954 = vld [vmem:[%s5] sm:$0xff]
  %v955 = vld [vmem:[%s5 + $0x8] sm:$0xff]
  %v956 = vld [vmem:[%s5 + $0x10] sm:$0xff]
  %v957 = vld [vmem:[%s5 + $0x18] sm:$0xff]
  %v958 = vld [vmem:[%s6] sm:$0x1]
  %v960 = vlaneseq
  %v961 = vshrl.u32 %v960, 7
  %v962 = vsub.s32 0, %v961
  %v963 = vrot.slane %v958, %v962
  %966 = vrot.lane.b32.xlu0 %v949, 32
  %v967 = vpop.permute.xlu0 %966
  %v968 = vsel %vm183, %v967, 0
  %970 = vmatprep.subr.mxu0 0.0
  %971 = vmatpush1.msra.mxu0 %v950
  %972 = vmatprep.subr.mxu0 0.0
  %973 = vmatpush1.msra.mxu0 %v951
  %974 = vmatprep.subr.mxu0 0.0
  %975 = vmatpush1.msra.mxu0 %v952
  %976 = vmatprep.subr.mxu0 0.0
  %977 = vmatpush1.msra.mxu0 %v953
  %978 = vmatprep.subr.mxu0 0.0
  %979 = vmatpush1.msra.mxu0 0.0
  %980 = vmatprep.subr.mxu0 0.0
  %981 = vmatpush1.msra.mxu0 0.0
  %982 = vmatprep.subr.mxu0 0.0
  %983 = vmatpush1.msra.mxu0 0.0
  %984 = vmatprep.subr.mxu0 0.0
  %985 = vmatpush1.msra.mxu0 0.0
  %986 = vmatprep.subr.mxu0 0.0
  %987 = vmatpush1.msra.mxu0 0.0
  %988 = vmatprep.subr.mxu0 0.0
  %989 = vmatpush1.msra.mxu0 0.0
  %990 = vmatprep.subr.mxu0 0.0
  %991 = vmatpush1.msra.mxu0 0.0
  %992 = vmatprep.subr.mxu0 0.0
  %993 = vmatpush1.msra.mxu0 0.0
  %994 = vmatprep.subr.mxu0 0.0
  %995 = vmatpush1.msra.mxu0 0.0
  %996 = vmatprep.subr.mxu0 0.0
  %997 = vmatpush1.msra.mxu0 0.0
  %998 = vmatprep.subr.mxu0 0.0
  %999 = vmatpush1.msra.mxu0 0.0
  %1000 = vmatprep.subr.mxu0 0.0
  %1001 = vmatpush1.msra.mxu0 0.0
  %1002 = vmatprep.subr.mxu0 0.0
  %1003 = vmatpush1.msra.mxu0 0.0
  %1004 = vmatprep.subr.mxu0 0.0
  %1005 = vmatpush1.msra.mxu0 0.0
  %1006 = vmatprep.subr.mxu0 0.0
  %1007 = vmatpush1.msra.mxu0 0.0
  %1008 = vmatprep.subr.mxu0 0.0
  %1009 = vmatpush1.msra.mxu0 0.0
  %1010 = vmatprep.subr.mxu0 0.0
  %1011 = vmatpush1.msra.mxu0 0.0
  %1012 = vmatprep.subr.mxu0 0.0
  %1013 = vmatpush1.msra.mxu0 0.0
  %1014 = vmatprep.subr.mxu0 0.0
  %1015 = vmatpush1.msra.mxu0 0.0
  %1016 = vmatprep.subr.mxu0 0.0
  %1017 = vmatpush1.msra.mxu0 0.0
  %1018 = vmatprep.subr.mxu0 0.0
  %1019 = vmatpush1.msra.mxu0 0.0
  %1020 = vmatprep.subr.mxu0 0.0
  %1021 = vmatpush1.msra.mxu0 0.0
  %1022 = vmatprep.subr.mxu0 0.0
  %1023 = vmatpush1.msra.mxu0 0.0
  %1024 = vmatprep.subr.mxu0 0.0
  %1025 = vmatpush1.msra.mxu0 0.0
  %1026 = vmatprep.subr.mxu0 0.0
  %1027 = vmatpush1.msra.mxu0 0.0
  %1028 = vmatprep.subr.mxu0 0.0
  %1029 = vmatpush1.msra.mxu0 0.0
  %1030 = vmatprep.subr.mxu0 0.0
  %1031 = vmatpush1.msra.mxu0 0.0
  %1032 = vmatprep.subr.mxu0 0.0
  %1033 = vmatpush1.msra.mxu0 0.0
  %1034 = vmatprep.mubr.f32.mxu0 0.0
  %1035 = vmatmul.mubr.f32.gmra.mrb[0].mxu0 %v281
  %v1036 = vpop.f32.mrb[0].mxu0
  %v1037 = vadd.f32 %v963, %v1036
  %v1038 = vpop.f32.mrb[0].mxu0
  %1039 = vmatprep.mubr.f32.mxu0 0.0
  %1040 = vmatmul.mubr.f32.gmra.mrb[0].mxu0 %v377
  %v1041 = vpop.f32.mrb[0].mxu0
  %v1042 = vadd.f32 %v963, %v1041
  %v1043 = vpop.f32.mrb[0].mxu0
  %1044 = vmatprep.mubr.f32.mxu0 0.0
  %1045 = vmatmul.mubr.f32.gmra.mrb[0].mxu0 %v473
  %v1046 = vpop.f32.mrb[0].mxu0
  %v1047 = vadd.f32 %v963, %v1046
  %v1048 = vpop.f32.mrb[0].mxu0
  %1049 = vmatprep.mubr.f32.mxu0 0.0
  %1050 = vmatmul.mubr.f32.gmra.mrb[0].mxu0 %v569
  %v1051 = vpop.f32.mrb[0].mxu0
  %v1052 = vadd.f32 %v963, %v1051
  %v1053 = vpop.f32.mrb[0].mxu0
  %1054 = vmatprep.mubr.f32.mxu0 0.0
  %1055 = vmatmul.mubr.f32.gmra.mrb[0].mxu0 %v665
  %v1056 = vpop.f32.mrb[0].mxu0
  %v1057 = vadd.f32 %v963, %v1056
  %v1058 = vpop.f32.mrb[0].mxu0
  %1059 = vmatprep.mubr.f32.mxu0 0.0
  %1060 = vmatmul.mubr.f32.gmra.mrb[0].mxu0 %v761
  %v1061 = vpop.f32.mrb[0].mxu0
  %v1062 = vadd.f32 %v963, %v1061
  %v1063 = vpop.f32.mrb[0].mxu0
  %1064 = vmatprep.mubr.f32.mxu0 0.0
  %1065 = vmatmul.mubr.f32.gmra.mrb[0].mxu0 %v857
  %v1066 = vpop.f32.mrb[0].mxu0
  %v1067 = vadd.f32 %v963, %v1066
  %v1068 = vpop.f32.mrb[0].mxu0
  %1069 = vmatprep.mubr.f32.mxu0 0.0
  %1070 = vmatmul.mubr.f32.gmra.mrb[0].mxu0 %v968
  %v1071 = vpop.f32.mrb[0].mxu0
  %v1072 = vadd.f32 %v963, %v1071
  %v1073 = vpop.f32.mrb[0].mxu0
  %1074 = vdwg.mxu0
  %1075 = vmatprep.subr.mxu0 0.0
  %1076 = vmatpush1.msra.mxu0 %v954
  %1077 = vmatprep.subr.mxu0 0.0
  %1078 = vmatpush1.msra.mxu0 %v955
  %1079 = vmatprep.subr.mxu0 0.0
  %1080 = vmatpush1.msra.mxu0 %v956
  %1081 = vmatprep.subr.mxu0 0.0
  %1082 = vmatpush1.msra.mxu0 %v957
  %1083 = vmatprep.subr.mxu0 0.0
  %1084 = vmatpush1.msra.mxu0 0.0
  %1085 = vmatprep.subr.mxu0 0.0
  %1086 = vmatpush1.msra.mxu0 0.0
  %1087 = vmatprep.subr.mxu0 0.0
  %1088 = vmatpush1.msra.mxu0 0.0
  %1089 = vmatprep.subr.mxu0 0.0
  %1090 = vmatpush1.msra.mxu0 0.0
  %1091 = vmatprep.subr.mxu0 0.0
  %1092 = vmatpush1.msra.mxu0 0.0
  %1093 = vmatprep.subr.mxu0 0.0
  %1094 = vmatpush1.msra.mxu0 0.0
  %1095 = vmatprep.subr.mxu0 0.0
  %1096 = vmatpush1.msra.mxu0 0.0
  %1097 = vmatprep.subr.mxu0 0.0
  %1098 = vmatpush1.msra.mxu0 0.0
  %1099 = vmatprep.subr.mxu0 0.0
  %1100 = vmatpush1.msra.mxu0 0.0
  %1101 = vmatprep.subr.mxu0 0.0
  %1102 = vmatpush1.msra.mxu0 0.0
  %1103 = vmatprep.subr.mxu0 0.0
  %1104 = vmatpush1.msra.mxu0 0.0
  %1105 = vmatprep.subr.mxu0 0.0
  %1106 = vmatpush1.msra.mxu0 0.0
  %1107 = vmatprep.subr.mxu0 0.0
  %1108 = vmatpush1.msra.mxu0 0.0
  %1109 = vmatprep.subr.mxu0 0.0
  %1110 = vmatpush1.msra.mxu0 0.0
  %1111 = vmatprep.subr.mxu0 0.0
  %1112 = vmatpush1.msra.mxu0 0.0
  %1113 = vmatprep.subr.mxu0 0.0
  %1114 = vmatpush1.msra.mxu0 0.0
  %1115 = vmatprep.subr.mxu0 0.0
  %1116 = vmatpush1.msra.mxu0 0.0
  %1117 = vmatprep.subr.mxu0 0.0
  %1118 = vmatpush1.msra.mxu0 0.0
  %1119 = vmatprep.subr.mxu0 0.0
  %1120 = vmatpush1.msra.mxu0 0.0
  %1121 = vmatprep.subr.mxu0 0.0
  %1122 = vmatpush1.msra.mxu0 0.0
  %1123 = vmatprep.subr.mxu0 0.0
  %1124 = vmatpush1.msra.mxu0 0.0
  %1125 = vmatprep.subr.mxu0 0.0
  %1126 = vmatpush1.msra.mxu0 0.0
  %1127 = vmatprep.subr.mxu0 0.0
  %1128 = vmatpush1.msra.mxu0 0.0
  %1129 = vmatprep.subr.mxu0 0.0
  %1130 = vmatpush1.msra.mxu0 0.0
  %1131 = vmatprep.subr.mxu0 0.0
  %1132 = vmatpush1.msra.mxu0 0.0
  %1133 = vmatprep.subr.mxu0 0.0
  %1134 = vmatpush1.msra.mxu0 0.0
  %1135 = vmatprep.subr.mxu0 0.0
  %1136 = vmatpush1.msra.mxu0 0.0
  %1137 = vmatprep.subr.mxu0 0.0
  %1138 = vmatpush1.msra.mxu0 0.0
  %1139 = vmatprep.mubr.f32.mxu0 0.0
  %1140 = vmatmul.mubr.f32.gmra.mrb[0].mxu0 %v185
  %v1141 = vpop.f32.mrb[0].mxu0
  %v1142 = vadd.f32 0.0, %v1141
  %v1143 = vpop.f32.mrb[0].mxu0
  %1144 = vdwg.mxu0
  %v1145 = vadd.f32 %v1037, %v1142
  %v1146 = vtanh.pop %v1145
  %v1147 = vmul.f32 %v1146, 0.5
  %v1148 = vadd.f32 %v1147, 0.5
  %v1149 = vmul.f32 %v1148, 0.0
  %1151 = vrot.lane.b32.xlu0 %v1146, 64
  %v1152 = vpop.permute.xlu0 %1151
  %v1154 = vmul.f32 %v1148, %v1152
  %1156 = vrot.lane.b32.xlu0 %v1154, 32
  %v1157 = vpop.permute.xlu0 %1156
  %v1159 = vadd.f32 %v1149, %v1157
  %v1160 = vtanh.pop %v1159
  %1162 = vrot.lane.b32.xlu0 %v1160, 64
  %v1163 = vpop.permute.xlu0 %1162
  %v1165 = vmul.f32 %v1148, %v1163
  %1167 = vrot.lane.b32.xlu0 %v1165, 32
  %v1168 = vpop.permute.xlu0 %1167
  %v1169 = vsel %vm183, %v1168, 0
  %1171 = vmatprep.subr.mxu0 0.0
  %1172 = vmatpush1.msra.mxu0 %v954
  %1173 = vmatprep.subr.mxu0 0.0
  %1174 = vmatpush1.msra.mxu0 %v955
  %1175 = vmatprep.subr.mxu0 0.0
  %1176 = vmatpush1.msra.mxu0 %v956
  %1177 = vmatprep.subr.mxu0 0.0
  %1178 = vmatpush1.msra.mxu0 %v957
  %1179 = vmatprep.subr.mxu0 0.0
  %1180 = vmatpush1.msra.mxu0 0.0
  %1181 = vmatprep.subr.mxu0 0.0
  %1182 = vmatpush1.msra.mxu0 0.0
  %1183 = vmatprep.subr.mxu0 0.0
  %1184 = vmatpush1.msra.mxu0 0.0
  %1185 = vmatprep.subr.mxu0 0.0
  %1186 = vmatpush1.msra.mxu0 0.0
  %1187 = vmatprep.subr.mxu0 0.0
  %1188 = vmatpush1.msra.mxu0 0.0
  %1189 = vmatprep.subr.mxu0 0.0
  %1190 = vmatpush1.msra.mxu0 0.0
  %1191 = vmatprep.subr.mxu0 0.0
  %1192 = vmatpush1.msra.mxu0 0.0
  %1193 = vmatprep.subr.mxu0 0.0
  %1194 = vmatpush1.msra.mxu0 0.0
  %1195 = vmatprep.subr.mxu0 0.0
  %1196 = vmatpush1.msra.mxu0 0.0
  %1197 = vmatprep.subr.mxu0 0.0
  %1198 = vmatpush1.msra.mxu0 0.0
  %1199 = vmatprep.subr.mxu0 0.0
  %1200 = vmatpush1.msra.mxu0 0.0
  %1201 = vmatprep.subr.mxu0 0.0
  %1202 = vmatpush1.msra.mxu0 0.0
  %1203 = vmatprep.subr.mxu0 0.0
  %1204 = vmatpush1.msra.mxu0 0.0
  %1205 = vmatprep.subr.mxu0 0.0
  %1206 = vmatpush1.msra.mxu0 0.0
  %1207 = vmatprep.subr.mxu0 0.0
  %1208 = vmatpush1.msra.mxu0 0.0
  %1209 = vmatprep.subr.mxu0 0.0
  %1210 = vmatpush1.msra.mxu0 0.0
  %1211 = vmatprep.subr.mxu0 0.0
  %1212 = vmatpush1.msra.mxu0 0.0
  %1213 = vmatprep.subr.mxu0 0.0
  %1214 = vmatpush1.msra.mxu0 0.0
  %1215 = vmatprep.subr.mxu0 0.0
  %1216 = vmatpush1.msra.mxu0 0.0
  %1217 = vmatprep.subr.mxu0 0.0
  %1218 = vmatpush1.msra.mxu0 0.0
  %1219 = vmatprep.subr.mxu0 0.0
  %1220 = vmatpush1.msra.mxu0 0.0
  %1221 = vmatprep.subr.mxu0 0.0
  %1222 = vmatpush1.msra.mxu0 0.0
  %1223 = vmatprep.subr.mxu0 0.0
  %1224 = vmatpush1.msra.mxu0 0.0
  %1225 = vmatprep.subr.mxu0 0.0
  %1226 = vmatpush1.msra.mxu0 0.0
  %1227 = vmatprep.subr.mxu0 0.0
  %1228 = vmatpush1.msra.mxu0 0.0
  %1229 = vmatprep.subr.mxu0 0.0
  %1230 = vmatpush1.msra.mxu0 0.0
  %1231 = vmatprep.subr.mxu0 0.0
  %1232 = vmatpush1.msra.mxu0 0.0
  %1233 = vmatprep.subr.mxu0 0.0
  %1234 = vmatpush1.msra.mxu0 0.0
  %1235 = vmatprep.mubr.f32.mxu0 0.0
  %1236 = vmatmul.mubr.f32.gmra.mrb[0].mxu0 %v1169
  %v1237 = vpop.f32.mrb[0].mxu0
  %v1238 = vadd.f32 0.0, %v1237
  %v1239 = vpop.f32.mrb[0].mxu0
  %1240 = vdwg.mxu0
  %v1241 = vadd.f32 %v1042, %v1238
  %v1242 = vtanh.pop %v1241
  %v1243 = vmul.f32 %v1242, 0.5
  %v1244 = vadd.f32 %v1243, 0.5
  %v1245 = vmul.f32 %v1244, %v1159
  %1247 = vrot.lane.b32.xlu0 %v1242, 64
  %v1248 = vpop.permute.xlu0 %1247
  %v1250 = vmul.f32 %v1244, %v1248
  %1252 = vrot.lane.b32.xlu0 %v1250, 32
  %v1253 = vpop.permute.xlu0 %1252
  %v1255 = vadd.f32 %v1245, %v1253
  %v1256 = vtanh.pop %v1255
  %1258 = vrot.lane.b32.xlu0 %v1256, 64
  %v1259 = vpop.permute.xlu0 %1258
  %v1261 = vmul.f32 %v1244, %v1259
  %1263 = vrot.lane.b32.xlu0 %v1261, 32
  %v1264 = vpop.permute.xlu0 %1263
  %v1265 = vsel %vm183, %v1264, 0
  %1267 = vmatprep.subr.mxu0 0.0
  %1268 = vmatpush1.msra.mxu0 %v954
  %1269 = vmatprep.subr.mxu0 0.0
  %1270 = vmatpush1.msra.mxu0 %v955
  %1271 = vmatprep.subr.mxu0 0.0
  %1272 = vmatpush1.msra.mxu0 %v956
  %1273 = vmatprep.subr.mxu0 0.0
  %1274 = vmatpush1.msra.mxu0 %v957
  %1275 = vmatprep.subr.mxu0 0.0
  %1276 = vmatpush1.msra.mxu0 0.0
  %1277 = vmatprep.subr.mxu0 0.0
  %1278 = vmatpush1.msra.mxu0 0.0
  %1279 = vmatprep.subr.mxu0 0.0
  %1280 = vmatpush1.msra.mxu0 0.0
  %1281 = vmatprep.subr.mxu0 0.0
  %1282 = vmatpush1.msra.mxu0 0.0
  %1283 = vmatprep.subr.mxu0 0.0
  %1284 = vmatpush1.msra.mxu0 0.0
  %1285 = vmatprep.subr.mxu0 0.0
  %1286 = vmatpush1.msra.mxu0 0.0
  %1287 = vmatprep.subr.mxu0 0.0
  %1288 = vmatpush1.msra.mxu0 0.0
  %1289 = vmatprep.subr.mxu0 0.0
  %1290 = vmatpush1.msra.mxu0 0.0
  %1291 = vmatprep.subr.mxu0 0.0
  %1292 = vmatpush1.msra.mxu0 0.0
  %1293 = vmatprep.subr.mxu0 0.0
  %1294 = vmatpush1.msra.mxu0 0.0
  %1295 = vmatprep.subr.mxu0 0.0
  %1296 = vmatpush1.msra.mxu0 0.0
  %1297 = vmatprep.subr.mxu0 0.0
  %1298 = vmatpush1.msra.mxu0 0.0
  %1299 = vmatprep.subr.mxu0 0.0
  %1300 = vmatpush1.msra.mxu0 0.0
  %1301 = vmatprep.subr.mxu0 0.0
  %1302 = vmatpush1.msra.mxu0 0.0
  %1303 = vmatprep.subr.mxu0 0.0
  %1304 = vmatpush1.msra.mxu0 0.0
  %1305 = vmatprep.subr.mxu0 0.0
  %1306 = vmatpush1.msra.mxu0 0.0
  %1307 = vmatprep.subr.mxu0 0.0
  %1308 = vmatpush1.msra.mxu0 0.0
  %1309 = vmatprep.subr.mxu0 0.0
  %1310 = vmatpush1.msra.mxu0 0.0
  %1311 = vmatprep.subr.mxu0 0.0
  %1312 = vmatpush1.msra.mxu0 0.0
  %1313 = vmatprep.subr.mxu0 0.0
  %1314 = vmatpush1.msra.mxu0 0.0
  %1315 = vmatprep.subr.mxu0 0.0
  %1316 = vmatpush1.msra.mxu0 0.0
  %1317 = vmatprep.subr.mxu0 0.0
  %1318 = vmatpush1.msra.mxu0 0.0
  %1319 = vmatprep.subr.mxu0 0.0
  %1320 = vmatpush1.msra.mxu0 0.0
  %1321 = vmatprep.subr.mxu0 0.0
  %1322 = vmatpush1.msra.mxu0 0.0
  %1323 = vmatprep.subr.mxu0 0.0
  %1324 = vmatpush1.msra.mxu0 0.0
  %1325 = vmatprep.subr.mxu0 0.0
  %1326 = vmatpush1.msra.mxu0 0.0
  %1327 = vmatprep.subr.mxu0 0.0
  %1328 = vmatpush1.msra.mxu0 0.0
  %1329 = vmatprep.subr.mxu0 0.0
  %1330 = vmatpush1.msra.mxu0 0.0
  %1331 = vmatprep.mubr.f32.mxu0 0.0
  %1332 = vmatmul.mubr.f32.gmra.mrb[0].mxu0 %v1265
  %v1333 = vpop.f32.mrb[0].mxu0
  %v1334 = vadd.f32 0.0, %v1333
  %v1335 = vpop.f32.mrb[0].mxu0
  %1336 = vdwg.mxu0
  %v1337 = vadd.f32 %v1047, %v1334
  %v1338 = vtanh.pop %v1337
  %v1339 = vmul.f32 %v1338, 0.5
  %v1340 = vadd.f32 %v1339, 0.5
  %v1341 = vmul.f32 %v1340, %v1255
  %1343 = vrot.lane.b32.xlu0 %v1338, 64
  %v1344 = vpop.permute.xlu0 %1343
  %v1346 = vmul.f32 %v1340, %v1344
  %1348 = vrot.lane.b32.xlu0 %v1346, 32
  %v1349 = vpop.permute.xlu0 %1348
  %v1351 = vadd.f32 %v1341, %v1349
  %v1352 = vtanh.pop %v1351
  %1354 = vrot.lane.b32.xlu0 %v1352, 64
  %v1355 = vpop.permute.xlu0 %1354
  %v1357 = vmul.f32 %v1340, %v1355
  %1359 = vrot.lane.b32.xlu0 %v1357, 32
  %v1360 = vpop.permute.xlu0 %1359
  %v1361 = vsel %vm183, %v1360, 0
  %1363 = vmatprep.subr.mxu0 0.0
  %1364 = vmatpush1.msra.mxu0 %v954
  %1365 = vmatprep.subr.mxu0 0.0
  %1366 = vmatpush1.msra.mxu0 %v955
  %1367 = vmatprep.subr.mxu0 0.0
  %1368 = vmatpush1.msra.mxu0 %v956
  %1369 = vmatprep.subr.mxu0 0.0
  %1370 = vmatpush1.msra.mxu0 %v957
  %1371 = vmatprep.subr.mxu0 0.0
  %1372 = vmatpush1.msra.mxu0 0.0
  %1373 = vmatprep.subr.mxu0 0.0
  %1374 = vmatpush1.msra.mxu0 0.0
  %1375 = vmatprep.subr.mxu0 0.0
  %1376 = vmatpush1.msra.mxu0 0.0
  %1377 = vmatprep.subr.mxu0 0.0
  %1378 = vmatpush1.msra.mxu0 0.0
  %1379 = vmatprep.subr.mxu0 0.0
  %1380 = vmatpush1.msra.mxu0 0.0
  %1381 = vmatprep.subr.mxu0 0.0
  %1382 = vmatpush1.msra.mxu0 0.0
  %1383 = vmatprep.subr.mxu0 0.0
  %1384 = vmatpush1.msra.mxu0 0.0
  %1385 = vmatprep.subr.mxu0 0.0
  %1386 = vmatpush1.msra.mxu0 0.0
  %1387 = vmatprep.subr.mxu0 0.0
  %1388 = vmatpush1.msra.mxu0 0.0
  %1389 = vmatprep.subr.mxu0 0.0
  %1390 = vmatpush1.msra.mxu0 0.0
  %1391 = vmatprep.subr.mxu0 0.0
  %1392 = vmatpush1.msra.mxu0 0.0
  %1393 = vmatprep.subr.mxu0 0.0
  %1394 = vmatpush1.msra.mxu0 0.0
  %1395 = vmatprep.subr.mxu0 0.0
  %1396 = vmatpush1.msra.mxu0 0.0
  %1397 = vmatprep.subr.mxu0 0.0
  %1398 = vmatpush1.msra.mxu0 0.0
  %1399 = vmatprep.subr.mxu0 0.0
  %1400 = vmatpush1.msra.mxu0 0.0
  %1401 = vmatprep.subr.mxu0 0.0
  %1402 = vmatpush1.msra.mxu0 0.0
  %1403 = vmatprep.subr.mxu0 0.0
  %1404 = vmatpush1.msra.mxu0 0.0
  %1405 = vmatprep.subr.mxu0 0.0
  %1406 = vmatpush1.msra.mxu0 0.0
  %1407 = vmatprep.subr.mxu0 0.0
  %1408 = vmatpush1.msra.mxu0 0.0
  %1409 = vmatprep.subr.mxu0 0.0
  %1410 = vmatpush1.msra.mxu0 0.0
  %1411 = vmatprep.subr.mxu0 0.0
  %1412 = vmatpush1.msra.mxu0 0.0
  %1413 = vmatprep.subr.mxu0 0.0
  %1414 = vmatpush1.msra.mxu0 0.0
  %1415 = vmatprep.subr.mxu0 0.0
  %1416 = vmatpush1.msra.mxu0 0.0
  %1417 = vmatprep.subr.mxu0 0.0
  %1418 = vmatpush1.msra.mxu0 0.0
  %1419 = vmatprep.subr.mxu0 0.0
  %1420 = vmatpush1.msra.mxu0 0.0
  %1421 = vmatprep.subr.mxu0 0.0
  %1422 = vmatpush1.msra.mxu0 0.0
  %1423 = vmatprep.subr.mxu0 0.0
  %1424 = vmatpush1.msra.mxu0 0.0
  %1425 = vmatprep.subr.mxu0 0.0
  %1426 = vmatpush1.msra.mxu0 0.0
  %1427 = vmatprep.mubr.f32.mxu0 0.0
  %1428 = vmatmul.mubr.f32.gmra.mrb[0].mxu0 %v1361
  %v1429 = vpop.f32.mrb[0].mxu0
  %v1430 = vadd.f32 0.0, %v1429
  %v1431 = vpop.f32.mrb[0].mxu0
  %1432 = vdwg.mxu0
  %v1433 = vadd.f32 %v1052, %v1430
  %v1434 = vtanh.pop %v1433
  %v1435 = vmul.f32 %v1434, 0.5
  %v1436 = vadd.f32 %v1435, 0.5
  %v1437 = vmul.f32 %v1436, %v1351
  %1439 = vrot.lane.b32.xlu0 %v1434, 64
  %v1440 = vpop.permute.xlu0 %1439
  %v1442 = vmul.f32 %v1436, %v1440
  %1444 = vrot.lane.b32.xlu0 %v1442, 32
  %v1445 = vpop.permute.xlu0 %1444
  %v1447 = vadd.f32 %v1437, %v1445
  %v1448 = vtanh.pop %v1447
  %1450 = vrot.lane.b32.xlu0 %v1448, 64
  %v1451 = vpop.permute.xlu0 %1450
  %v1453 = vmul.f32 %v1436, %v1451
  %1455 = vrot.lane.b32.xlu0 %v1453, 32
  %v1456 = vpop.permute.xlu0 %1455
  %v1457 = vsel %vm183, %v1456, 0
  %1459 = vmatprep.subr.mxu0 0.0
  %1460 = vmatpush1.msra.mxu0 %v954
  %1461 = vmatprep.subr.mxu0 0.0
  %1462 = vmatpush1.msra.mxu0 %v955
  %1463 = vmatprep.subr.mxu0 0.0
  %1464 = vmatpush1.msra.mxu0 %v956
  %1465 = vmatprep.subr.mxu0 0.0
  %1466 = vmatpush1.msra.mxu0 %v957
  %1467 = vmatprep.subr.mxu0 0.0
  %1468 = vmatpush1.msra.mxu0 0.0
  %1469 = vmatprep.subr.mxu0 0.0
  %1470 = vmatpush1.msra.mxu0 0.0
  %1471 = vmatprep.subr.mxu0 0.0
  %1472 = vmatpush1.msra.mxu0 0.0
  %1473 = vmatprep.subr.mxu0 0.0
  %1474 = vmatpush1.msra.mxu0 0.0
  %1475 = vmatprep.subr.mxu0 0.0
  %1476 = vmatpush1.msra.mxu0 0.0
  %1477 = vmatprep.subr.mxu0 0.0
  %1478 = vmatpush1.msra.mxu0 0.0
  %1479 = vmatprep.subr.mxu0 0.0
  %1480 = vmatpush1.msra.mxu0 0.0
  %1481 = vmatprep.subr.mxu0 0.0
  %1482 = vmatpush1.msra.mxu0 0.0
  %1483 = vmatprep.subr.mxu0 0.0
  %1484 = vmatpush1.msra.mxu0 0.0
  %1485 = vmatprep.subr.mxu0 0.0
  %1486 = vmatpush1.msra.mxu0 0.0
  %1487 = vmatprep.subr.mxu0 0.0
  %1488 = vmatpush1.msra.mxu0 0.0
  %1489 = vmatprep.subr.mxu0 0.0
  %1490 = vmatpush1.msra.mxu0 0.0
  %1491 = vmatprep.subr.mxu0 0.0
  %1492 = vmatpush1.msra.mxu0 0.0
  %1493 = vmatprep.subr.mxu0 0.0
  %1494 = vmatpush1.msra.mxu0 0.0
  %1495 = vmatprep.subr.mxu0 0.0
  %1496 = vmatpush1.msra.mxu0 0.0
  %1497 = vmatprep.subr.mxu0 0.0
  %1498 = vmatpush1.msra.mxu0 0.0
  %1499 = vmatprep.subr.mxu0 0.0
  %1500 = vmatpush1.msra.mxu0 0.0
  %1501 = vmatprep.subr.mxu0 0.0
  %1502 = vmatpush1.msra.mxu0 0.0
  %1503 = vmatprep.subr.mxu0 0.0
  %1504 = vmatpush1.msra.mxu0 0.0
  %1505 = vmatprep.subr.mxu0 0.0
  %1506 = vmatpush1.msra.mxu0 0.0
  %1507 = vmatprep.subr.mxu0 0.0
  %1508 = vmatpush1.msra.mxu0 0.0
  %1509 = vmatprep.subr.mxu0 0.0
  %1510 = vmatpush1.msra.mxu0 0.0
  %1511 = vmatprep.subr.mxu0 0.0
  %1512 = vmatpush1.msra.mxu0 0.0
  %1513 = vmatprep.subr.mxu0 0.0
  %1514 = vmatpush1.msra.mxu0 0.0
  %1515 = vmatprep.subr.mxu0 0.0
  %1516 = vmatpush1.msra.mxu0 0.0
  %1517 = vmatprep.subr.mxu0 0.0
  %1518 = vmatpush1.msra.mxu0 0.0
  %1519 = vmatprep.subr.mxu0 0.0
  %1520 = vmatpush1.msra.mxu0 0.0
  %1521 = vmatprep.subr.mxu0 0.0
  %1522 = vmatpush1.msra.mxu0 0.0
  %1523 = vmatprep.mubr.f32.mxu0 0.0
  %1524 = vmatmul.mubr.f32.gmra.mrb[0].mxu0 %v1457
  %v1525 = vpop.f32.mrb[0].mxu0
  %v1526 = vadd.f32 0.0, %v1525
  %v1527 = vpop.f32.mrb[0].mxu0
  %1528 = vdwg.mxu0
  %v1529 = vadd.f32 %v1057, %v1526
  %v1530 = vtanh.pop %v1529
  %v1531 = vmul.f32 %v1530, 0.5
  %v1532 = vadd.f32 %v1531, 0.5
  %v1533 = vmul.f32 %v1532, %v1447
  %1535 = vrot.lane.b32.xlu0 %v1530, 64
  %v1536 = vpop.permute.xlu0 %1535
  %v1538 = vmul.f32 %v1532, %v1536
  %1540 = vrot.lane.b32.xlu0 %v1538, 32
  %v1541 = vpop.permute.xlu0 %1540
  %v1543 = vadd.f32 %v1533, %v1541
  %v1544 = vtanh.pop %v1543
  %1546 = vrot.lane.b32.xlu0 %v1544, 64
  %v1547 = vpop.permute.xlu0 %1546
  %v1549 = vmul.f32 %v1532, %v1547
  %1551 = vrot.lane.b32.xlu0 %v1549, 32
  %v1552 = vpop.permute.xlu0 %1551
  %v1553 = vsel %vm183, %v1552, 0
  %1555 = vmatprep.subr.mxu0 0.0
  %1556 = vmatpush1.msra.mxu0 %v954
  %1557 = vmatprep.subr.mxu0 0.0
  %1558 = vmatpush1.msra.mxu0 %v955
  %1559 = vmatprep.subr.mxu0 0.0
  %1560 = vmatpush1.msra.mxu0 %v956
  %1561 = vmatprep.subr.mxu0 0.0
  %1562 = vmatpush1.msra.mxu0 %v957
  %1563 = vmatprep.subr.mxu0 0.0
  %1564 = vmatpush1.msra.mxu0 0.0
  %1565 = vmatprep.subr.mxu0 0.0
  %1566 = vmatpush1.msra.mxu0 0.0
  %1567 = vmatprep.subr.mxu0 0.0
  %1568 = vmatpush1.msra.mxu0 0.0
  %1569 = vmatprep.subr.mxu0 0.0
  %1570 = vmatpush1.msra.mxu0 0.0
  %1571 = vmatprep.subr.mxu0 0.0
  %1572 = vmatpush1.msra.mxu0 0.0
  %1573 = vmatprep.subr.mxu0 0.0
  %1574 = vmatpush1.msra.mxu0 0.0
  %1575 = vmatprep.subr.mxu0 0.0
  %1576 = vmatpush1.msra.mxu0 0.0
  %1577 = vmatprep.subr.mxu0 0.0
  %1578 = vmatpush1.msra.mxu0 0.0
  %1579 = vmatprep.subr.mxu0 0.0
  %1580 = vmatpush1.msra.mxu0 0.0
  %1581 = vmatprep.subr.mxu0 0.0
  %1582 = vmatpush1.msra.mxu0 0.0
  %1583 = vmatprep.subr.mxu0 0.0
  %1584 = vmatpush1.msra.mxu0 0.0
  %1585 = vmatprep.subr.mxu0 0.0
  %1586 = vmatpush1.msra.mxu0 0.0
  %1587 = vmatprep.subr.mxu0 0.0
  %1588 = vmatpush1.msra.mxu0 0.0
  %1589 = vmatprep.subr.mxu0 0.0
  %1590 = vmatpush1.msra.mxu0 0.0
  %1591 = vmatprep.subr.mxu0 0.0
  %1592 = vmatpush1.msra.mxu0 0.0
  %1593 = vmatprep.subr.mxu0 0.0
  %1594 = vmatpush1.msra.mxu0 0.0
  %1595 = vmatprep.subr.mxu0 0.0
  %1596 = vmatpush1.msra.mxu0 0.0
  %1597 = vmatprep.subr.mxu0 0.0
  %1598 = vmatpush1.msra.mxu0 0.0
  %1599 = vmatprep.subr.mxu0 0.0
  %1600 = vmatpush1.msra.mxu0 0.0
  %1601 = vmatprep.subr.mxu0 0.0
  %1602 = vmatpush1.msra.mxu0 0.0
  %1603 = vmatprep.subr.mxu0 0.0
  %1604 = vmatpush1.msra.mxu0 0.0
  %1605 = vmatprep.subr.mxu0 0.0
  %1606 = vmatpush1.msra.mxu0 0.0
  %1607 = vmatprep.subr.mxu0 0.0
  %1608 = vmatpush1.msra.mxu0 0.0
  %1609 = vmatprep.subr.mxu0 0.0
  %1610 = vmatpush1.msra.mxu0 0.0
  %1611 = vmatprep.subr.mxu0 0.0
  %1612 = vmatpush1.msra.mxu0 0.0
  %1613 = vmatprep.subr.mxu0 0.0
  %1614 = vmatpush1.msra.mxu0 0.0
  %1615 = vmatprep.subr.mxu0 0.0
  %1616 = vmatpush1.msra.mxu0 0.0
  %1617 = vmatprep.subr.mxu0 0.0
  %1618 = vmatpush1.msra.mxu0 0.0
  %1619 = vmatprep.mubr.f32.mxu0 0.0
  %1620 = vmatmul.mubr.f32.gmra.mrb[0].mxu0 %v1553
  %v1621 = vpop.f32.mrb[0].mxu0
  %v1622 = vadd.f32 0.0, %v1621
  %v1623 = vpop.f32.mrb[0].mxu0
  %1624 = vdwg.mxu0
  %v1625 = vadd.f32 %v1062, %v1622
  %v1626 = vtanh.pop %v1625
  %v1627 = vmul.f32 %v1626, 0.5
  %v1628 = vadd.f32 %v1627, 0.5
  %v1629 = vmul.f32 %v1628, %v1543
  %1631 = vrot.lane.b32.xlu0 %v1626, 64
  %v1632 = vpop.permute.xlu0 %1631
  %v1634 = vmul.f32 %v1628, %v1632
  %1636 = vrot.lane.b32.xlu0 %v1634, 32
  %v1637 = vpop.permute.xlu0 %1636
  %v1639 = vadd.f32 %v1629, %v1637
  %v1640 = vtanh.pop %v1639
  %1642 = vrot.lane.b32.xlu0 %v1640, 64
  %v1643 = vpop.permute.xlu0 %1642
  %v1645 = vmul.f32 %v1628, %v1643
  %1647 = vrot.lane.b32.xlu0 %v1645, 32
  %v1648 = vpop.permute.xlu0 %1647
  %v1649 = vsel %vm183, %v1648, 0
  %1651 = vmatprep.subr.mxu0 0.0
  %1652 = vmatpush1.msra.mxu0 %v954
  %1653 = vmatprep.subr.mxu0 0.0
  %1654 = vmatpush1.msra.mxu0 %v955
  %1655 = vmatprep.subr.mxu0 0.0
  %1656 = vmatpush1.msra.mxu0 %v956
  %1657 = vmatprep.subr.mxu0 0.0
  %1658 = vmatpush1.msra.mxu0 %v957
  %1659 = vmatprep.subr.mxu0 0.0
  %1660 = vmatpush1.msra.mxu0 0.0
  %1661 = vmatprep.subr.mxu0 0.0
  %1662 = vmatpush1.msra.mxu0 0.0
  %1663 = vmatprep.subr.mxu0 0.0
  %1664 = vmatpush1.msra.mxu0 0.0
  %1665 = vmatprep.subr.mxu0 0.0
  %1666 = vmatpush1.msra.mxu0 0.0
  %1667 = vmatprep.subr.mxu0 0.0
  %1668 = vmatpush1.msra.mxu0 0.0
  %1669 = vmatprep.subr.mxu0 0.0
  %1670 = vmatpush1.msra.mxu0 0.0
  %1671 = vmatprep.subr.mxu0 0.0
  %1672 = vmatpush1.msra.mxu0 0.0
  %1673 = vmatprep.subr.mxu0 0.0
  %1674 = vmatpush1.msra.mxu0 0.0
  %1675 = vmatprep.subr.mxu0 0.0
  %1676 = vmatpush1.msra.mxu0 0.0
  %1677 = vmatprep.subr.mxu0 0.0
  %1678 = vmatpush1.msra.mxu0 0.0
  %1679 = vmatprep.subr.mxu0 0.0
  %1680 = vmatpush1.msra.mxu0 0.0
  %1681 = vmatprep.subr.mxu0 0.0
  %1682 = vmatpush1.msra.mxu0 0.0
  %1683 = vmatprep.subr.mxu0 0.0
  %1684 = vmatpush1.msra.mxu0 0.0
  %1685 = vmatprep.subr.mxu0 0.0
  %1686 = vmatpush1.msra.mxu0 0.0
  %1687 = vmatprep.subr.mxu0 0.0
  %1688 = vmatpush1.msra.mxu0 0.0
  %1689 = vmatprep.subr.mxu0 0.0
  %1690 = vmatpush1.msra.mxu0 0.0
  %1691 = vmatprep.subr.mxu0 0.0
  %1692 = vmatpush1.msra.mxu0 0.0
  %1693 = vmatprep.subr.mxu0 0.0
  %1694 = vmatpush1.msra.mxu0 0.0
  %1695 = vmatprep.subr.mxu0 0.0
  %1696 = vmatpush1.msra.mxu0 0.0
  %1697 = vmatprep.subr.mxu0 0.0
  %1698 = vmatpush1.msra.mxu0 0.0
  %1699 = vmatprep.subr.mxu0 0.0
  %1700 = vmatpush1.msra.mxu0 0.0
  %1701 = vmatprep.subr.mxu0 0.0
  %1702 = vmatpush1.msra.mxu0 0.0
  %1703 = vmatprep.subr.mxu0 0.0
  %1704 = vmatpush1.msra.mxu0 0.0
  %1705 = vmatprep.subr.mxu0 0.0
  %1706 = vmatpush1.msra.mxu0 0.0
  %1707 = vmatprep.subr.mxu0 0.0
  %1708 = vmatpush1.msra.mxu0 0.0
  %1709 = vmatprep.subr.mxu0 0.0
  %1710 = vmatpush1.msra.mxu0 0.0
  %1711 = vmatprep.subr.mxu0 0.0
  %1712 = vmatpush1.msra.mxu0 0.0
  %1713 = vmatprep.subr.mxu0 0.0
  %1714 = vmatpush1.msra.mxu0 0.0
  %1715 = vmatprep.mubr.f32.mxu0 0.0
  %1716 = vmatmul.mubr.f32.gmra.mrb[0].mxu0 %v1649
  %v1717 = vpop.f32.mrb[0].mxu0
  %v1718 = vadd.f32 0.0, %v1717
  %v1719 = vpop.f32.mrb[0].mxu0
  %1720 = vdwg.mxu0
  %v1721 = vadd.f32 %v1067, %v1718
  %v1722 = vtanh.pop %v1721
  %v1723 = vmul.f32 %v1722, 0.5
  %v1724 = vadd.f32 %v1723, 0.5
  %v1725 = vmul.f32 %v1724, %v1639
  %1727 = vrot.lane.b32.xlu0 %v1722, 64
  %v1728 = vpop.permute.xlu0 %1727
  %v1730 = vmul.f32 %v1724, %v1728
  %1732 = vrot.lane.b32.xlu0 %v1730, 32
  %v1733 = vpop.permute.xlu0 %1732
  %v1735 = vadd.f32 %v1725, %v1733
  %v1736 = vtanh.pop %v1735
  %1738 = vrot.lane.b32.xlu0 %v1736, 64
  %v1739 = vpop.permute.xlu0 %1738
  %v1741 = vmul.f32 %v1724, %v1739
  %1743 = vrot.lane.b32.xlu0 %v1741, 32
  %v1744 = vpop.permute.xlu0 %1743
  %v1745 = vsel %vm183, %v1744, 0
  %1747 = vmatprep.subr.mxu0 0.0
  %1748 = vmatpush1.msra.mxu0 %v954
  %1749 = vmatprep.subr.mxu0 0.0
  %1750 = vmatpush1.msra.mxu0 %v955
  %1751 = vmatprep.subr.mxu0 0.0
  %1752 = vmatpush1.msra.mxu0 %v956
  %1753 = vmatprep.subr.mxu0 0.0
  %1754 = vmatpush1.msra.mxu0 %v957
  %1755 = vmatprep.subr.mxu0 0.0
  %1756 = vmatpush1.msra.mxu0 0.0
  %1757 = vmatprep.subr.mxu0 0.0
  %1758 = vmatpush1.msra.mxu0 0.0
  %1759 = vmatprep.subr.mxu0 0.0
  %1760 = vmatpush1.msra.mxu0 0.0
  %1761 = vmatprep.subr.mxu0 0.0
  %1762 = vmatpush1.msra.mxu0 0.0
  %1763 = vmatprep.subr.mxu0 0.0
  %1764 = vmatpush1.msra.mxu0 0.0
  %1765 = vmatprep.subr.mxu0 0.0
  %1766 = vmatpush1.msra.mxu0 0.0
  %1767 = vmatprep.subr.mxu0 0.0
  %1768 = vmatpush1.msra.mxu0 0.0
  %1769 = vmatprep.subr.mxu0 0.0
  %1770 = vmatpush1.msra.mxu0 0.0
  %1771 = vmatprep.subr.mxu0 0.0
  %1772 = vmatpush1.msra.mxu0 0.0
  %1773 = vmatprep.subr.mxu0 0.0
  %1774 = vmatpush1.msra.mxu0 0.0
  %1775 = vmatprep.subr.mxu0 0.0
  %1776 = vmatpush1.msra.mxu0 0.0
  %1777 = vmatprep.subr.mxu0 0.0
  %1778 = vmatpush1.msra.mxu0 0.0
  %1779 = vmatprep.subr.mxu0 0.0
  %1780 = vmatpush1.msra.mxu0 0.0
  %1781 = vmatprep.subr.mxu0 0.0
  %1782 = vmatpush1.msra.mxu0 0.0
  %1783 = vmatprep.subr.mxu0 0.0
  %1784 = vmatpush1.msra.mxu0 0.0
  %1785 = vmatprep.subr.mxu0 0.0
  %1786 = vmatpush1.msra.mxu0 0.0
  %1787 = vmatprep.subr.mxu0 0.0
  %1788 = vmatpush1.msra.mxu0 0.0
  %1789 = vmatprep.subr.mxu0 0.0
  %1790 = vmatpush1.msra.mxu0 0.0
  %1791 = vmatprep.subr.mxu0 0.0
  %1792 = vmatpush1.msra.mxu0 0.0
  %1793 = vmatprep.subr.mxu0 0.0
  %1794 = vmatpush1.msra.mxu0 0.0
  %1795 = vmatprep.subr.mxu0 0.0
  %1796 = vmatpush1.msra.mxu0 0.0
  %1797 = vmatprep.subr.mxu0 0.0
  %1798 = vmatpush1.msra.mxu0 0.0
  %1799 = vmatprep.subr.mxu0 0.0
  %1800 = vmatpush1.msra.mxu0 0.0
  %1801 = vmatprep.subr.mxu0 0.0
  %1802 = vmatpush1.msra.mxu0 0.0
  %1803 = vmatprep.subr.mxu0 0.0
  %1804 = vmatpush1.msra.mxu0 0.0
  %1805 = vmatprep.subr.mxu0 0.0
  %1806 = vmatpush1.msra.mxu0 0.0
  %1807 = vmatprep.subr.mxu0 0.0
  %1808 = vmatpush1.msra.mxu0 0.0
  %1809 = vmatprep.subr.mxu0 0.0
  %1810 = vmatpush1.msra.mxu0 0.0
  %1811 = vmatprep.mubr.f32.mxu0 0.0
  %1812 = vmatmul.mubr.f32.gmra.mrb[0].mxu0 %v1745
  %v1813 = vpop.f32.mrb[0].mxu0
  %v1814 = vadd.f32 0.0, %v1813
  %v1815 = vpop.f32.mrb[0].mxu0
  %1816 = vdwg.mxu0
  %v1817 = vadd.f32 %v1072, %v1814
  %v1818 = vtanh.pop %v1817
  %v1819 = vmul.f32 %v1818, 0.5
  %v1820 = vadd.f32 %v1819, 0.5
  %v1821 = vmul.f32 %v1820, %v1735
  %1823 = vrot.lane.b32.xlu0 %v1818, 64
  %v1824 = vpop.permute.xlu0 %1823
  %v1826 = vmul.f32 %v1820, %v1824
  %1828 = vrot.lane.b32.xlu0 %v1826, 32
  %v1829 = vpop.permute.xlu0 %1828
  %v1831 = vadd.f32 %v1821, %v1829
  %v1832 = vtanh.pop %v1831
  %1834 = vrot.lane.b32.xlu0 %v1832, 64
  %v1835 = vpop.permute.xlu0 %1834
  %v1837 = vmul.f32 %v1820, %v1835
  %v1838 = vld [vmem:[%s7] sm:$0xff]
  %v1839 = vld [vmem:[%s7 + $0x8] sm:$0xff]
  %v1840 = vld [vmem:[%s7 + $0x10] sm:$0xff]
  %v1841 = vld [vmem:[%s7 + $0x18] sm:$0xff]
  %v1842 = vld [vmem:[%s8] sm:$0x1]
  %v1844 = vlaneseq
  %v1845 = vshrl.u32 %v1844, 7
  %v1846 = vsub.s32 0, %v1845
  %v1847 = vrot.slane %v1842, %v1846
  %1850 = vrot.lane.b32.xlu0 %v1837, 32
  %v1851 = vpop.permute.xlu0 %1850
  %v1852 = vsel %vm183, %v1851, 0
  %1854 = vmatprep.subr.mxu0 0.0
  %1855 = vmatpush1.msra.mxu0 %v1838
  %1856 = vmatprep.subr.mxu0 0.0
  %1857 = vmatpush1.msra.mxu0 %v1839
  %1858 = vmatprep.subr.mxu0 0.0
  %1859 = vmatpush1.msra.mxu0 %v1840
  %1860 = vmatprep.subr.mxu0 0.0
  %1861 = vmatpush1.msra.mxu0 %v1841
  %1862 = vmatprep.subr.mxu0 0.0
  %1863 = vmatpush1.msra.mxu0 0.0
  %1864 = vmatprep.subr.mxu0 0.0
  %1865 = vmatpush1.msra.mxu0 0.0
  %1866 = vmatprep.subr.mxu0 0.0
  %1867 = vmatpush1.msra.mxu0 0.0
  %1868 = vmatprep.subr.mxu0 0.0
  %1869 = vmatpush1.msra.mxu0 0.0
  %1870 = vmatprep.subr.mxu0 0.0
  %1871 = vmatpush1.msra.mxu0 0.0
  %1872 = vmatprep.subr.mxu0 0.0
  %1873 = vmatpush1.msra.mxu0 0.0
  %1874 = vmatprep.subr.mxu0 0.0
  %1875 = vmatpush1.msra.mxu0 0.0
  %1876 = vmatprep.subr.mxu0 0.0
  %1877 = vmatpush1.msra.mxu0 0.0
  %1878 = vmatprep.subr.mxu0 0.0
  %1879 = vmatpush1.msra.mxu0 0.0
  %1880 = vmatprep.subr.mxu0 0.0
  %1881 = vmatpush1.msra.mxu0 0.0
  %1882 = vmatprep.subr.mxu0 0.0
  %1883 = vmatpush1.msra.mxu0 0.0
  %1884 = vmatprep.subr.mxu0 0.0
  %1885 = vmatpush1.msra.mxu0 0.0
  %1886 = vmatprep.subr.mxu0 0.0
  %1887 = vmatpush1.msra.mxu0 0.0
  %1888 = vmatprep.subr.mxu0 0.0
  %1889 = vmatpush1.msra.mxu0 0.0
  %1890 = vmatprep.subr.mxu0 0.0
  %1891 = vmatpush1.msra.mxu0 0.0
  %1892 = vmatprep.subr.mxu0 0.0
  %1893 = vmatpush1.msra.mxu0 0.0
  %1894 = vmatprep.subr.mxu0 0.0
  %1895 = vmatpush1.msra.mxu0 0.0
  %1896 = vmatprep.subr.mxu0 0.0
  %1897 = vmatpush1.msra.mxu0 0.0
  %1898 = vmatprep.subr.mxu0 0.0
  %1899 = vmatpush1.msra.mxu0 0.0
  %1900 = vmatprep.subr.mxu0 0.0
  %1901 = vmatpush1.msra.mxu0 0.0
  %1902 = vmatprep.subr.mxu0 0.0
  %1903 = vmatpush1.msra.mxu0 0.0
  %1904 = vmatprep.subr.mxu0 0.0
  %1905 = vmatpush1.msra.mxu0 0.0
  %1906 = vmatprep.subr.mxu0 0.0
  %1907 = vmatpush1.msra.mxu0 0.0
  %1908 = vmatprep.subr.mxu0 0.0
  %1909 = vmatpush1.msra.mxu0 0.0
  %1910 = vmatprep.subr.mxu0 0.0
  %1911 = vmatpush1.msra.mxu0 0.0
  %1912 = vmatprep.subr.mxu0 0.0
  %1913 = vmatpush1.msra.mxu0 0.0
  %1914 = vmatprep.subr.mxu0 0.0
  %1915 = vmatpush1.msra.mxu0 0.0
  %1916 = vmatprep.subr.mxu0 0.0
  %1917 = vmatpush1.msra.mxu0 0.0
  %1918 = vmatprep.mubr.f32.mxu0 0.0
  %1919 = vmatmul.mubr.f32.gmra.mrb[0].mxu0 %v1852
  %v1920 = vpop.f32.mrb[0].mxu0
  %v1921 = vadd.f32 %v1847, %v1920
  %v1922 = vpop.f32.mrb[0].mxu0
  %1923 = vdwg.mxu0
  %1924 = vmax.xlane.f32.xlu0 %v1921
  %v1925 = vpop.xlane.xlu0 %1924
  %v1926 = vsub.f32 %v1921, %v1925
  %v1927 = vmul.f32 %v1926, 1.442695
  %v1928 = vpow.pop %v1927
  %1929 = vadd.xlane.f32.xlu0 %v1928
  %v1930 = vpop.xlane.xlu0 %1929
  %v1931 = vlog2.pop %v1930
  %v1932 = vmul.f32 %v1931, 0.6931472
  %v1933 = vsub.f32 %v1926, %v1932
  %1934 = vst [vmem:[%s9] sm:$0xff] %v1933
  // Predicated region
  $region38: #{lstm_keyword_spotter_forward.1} parent=0 // pred_check
    _
  $region39: #{lstm_keyword_spotter_forward.1} parent=0 // pred_check_branch
    %1936 = sbr.rel (0) target = $region41
  $region40: #{lstm_keyword_spotter_forward.1} parent=0 // pred_region
    _
  $region41: #{lstm_keyword_spotter_forward.1} parent=0 // pred_fallthru
    _
  // Predicated region
  $region42: #{lstm_keyword_spotter_forward.1} parent=0 // pred_check
    _
  $region43: #{lstm_keyword_spotter_forward.1} parent=0 // pred_check_branch
    %1938 = sbr.rel (0) target = $region45
  $region44: #{lstm_keyword_spotter_forward.1} parent=0 // pred_region
    _
  $region45: #{lstm_keyword_spotter_forward.1} parent=0 // pred_fallthru
    _

</llo_original>
